<compile_context>
chip_gen: v6e
topology: v6e:2x2x1
jax: 0.10.0
libtpu: 0.0.40
codegen_flags: <defaults>
</compile_context>

<pallas_src>
import jax
import jax.numpy as jnp
from jax import lax
from jax.experimental import pallas as pl
from jax.experimental.pallas import tpu as pltpu

NUM_CHOICES = 4


def _layernorm(x, gamma, beta, eps=1e-12):
    mu = jnp.mean(x, axis=-1, keepdims=True)
    var = jnp.mean((x - mu) ** 2, axis=-1, keepdims=True)
    return (x - mu) * lax.rsqrt(var + eps) * gamma + beta


def encoder_kernel(idx_ref,                     # [NB, S] int32 (SMEM, scalar prefetch)
                   seg_ref,                     # [1, S, 1] f32 (per-sequence VMEM block)
                   word_hbm,                    # [V, H] f32    (HBM, manual row gather)
                   type_emb_ref, pos_emb_ref,   # [2, H], [S, H] f32 (resident VMEM)
                   g_emb_ref, b_emb_ref,
                   wqkv_ref, bqkv_ref, wo_ref, bo_ref,
                   g1_ref, b1_ref,
                   wff1_ref, bff1_ref, wff2_ref, bff2_ref,
                   g2_ref, b2_ref,
                   wp_ref, bp_ref,
                   pooled_ref,                  # [1, 1, H] f32 out block
                   word_buf, sems):             # scratch: VMEM [S,H] f32, DMA sems (S,)
    nb = pl.program_id(0)
    S, H = word_buf.shape

    # ---- word-embedding row gather: S small HBM->VMEM DMAs addressed from SMEM ids ----
    copies = []
    for s in range(S):                          # S is a small compile-time constant
        cp = pltpu.make_async_copy(
            word_hbm.at[pl.ds(idx_ref[nb, s], 1)],
            word_buf.at[pl.ds(s, 1)],
            sems.at[s])
        cp.start()
        copies.append(cp)
    for cp in copies:
        cp.wait()

    word = word_buf[...]                                          # [S, H] f32
    seg = seg_ref[...].reshape(S, 1)                              # [S, 1] f32 (0/1)
    t0 = type_emb_ref[0:1, :]
    t1 = type_emb_ref[1:2, :]
    tok_type = t0 + seg * (t1 - t0)                               # [S, H] (2-row lerp)
    h = _layernorm(word + tok_type + pos_emb_ref[...],            # pos added in place
                   g_emb_ref[...], b_emb_ref[...])                # f32 [S, H]

    # ---- single-head self-attention; fused QKV, 1/sqrt(H) pre-folded into Wq ----
    qkv = jnp.dot(h.astype(jnp.bfloat16), wqkv_ref[...],
                  preferred_element_type=jnp.float32) + bqkv_ref[...]     # [S, 3H]
    # NOTE: at toy H=32 these slices cut inside one 128-lane vreg (XLU shuffles); at real
    # H=768 the boundaries land on 128-lane multiples and the slices are free.
    q = qkv[:, :H].astype(jnp.bfloat16)
    k = qkv[:, H:2 * H].astype(jnp.bfloat16)
    v = qkv[:, 2 * H:].astype(jnp.bfloat16)

    scores = jnp.dot(q, k.T, preferred_element_type=jnp.float32)          # [S, S]
    m = jnp.max(scores, axis=-1, keepdims=True)
    e = jnp.exp(scores - m)
    attn = e * pl.reciprocal(jnp.sum(e, axis=-1, keepdims=True), approx=True)
    ctx = jnp.dot(attn.astype(jnp.bfloat16), v,
                  preferred_element_type=jnp.float32)                     # [S, H]
    attn_out = jnp.dot(ctx.astype(jnp.bfloat16), wo_ref[...],
                       preferred_element_type=jnp.float32) + bo_ref[...]
    h = _layernorm(h + attn_out, g1_ref[...], b1_ref[...])

    # ---- feed-forward block ----
    ff = jnp.dot(h.astype(jnp.bfloat16), wff1_ref[...],
                 preferred_element_type=jnp.float32) + bff1_ref[...]
    # TODO(synk): PyTorch nn.GELU defaults to exact erf; the tanh approximation is used here.
    ff = jax.nn.gelu(ff)
    ff = jnp.dot(ff.astype(jnp.bfloat16), wff2_ref[...],
                 preferred_element_type=jnp.float32) + bff2_ref[...]
    h = _layernorm(h + ff, g2_ref[...], b2_ref[...])

    # ---- pooler on the CLS row (static first-row slice of this per-sequence tile) ----
    cls = h[0:1, :]                                                       # [1, H]
    pooled = jnp.tanh(jnp.dot(cls.astype(jnp.bfloat16), wp_ref[...],
                              preferred_element_type=jnp.float32) + bp_ref[...])
    pooled_ref[...] = pooled.reshape(1, 1, H)


def head_kernel(pooled_ref, wd_ref, bd_ref, cat_ref, sm_ref):
    B, C = cat_ref.shape
    # dropout == identity (inference); dense1 + softmax1 (dim=1) for all 4*B rows at once
    logits = jnp.dot(pooled_ref[...].astype(jnp.bfloat16), wd_ref[...],
                     preferred_element_type=jnp.float32) + bd_ref[...]    # [NB, 2]
    m = jnp.max(logits, axis=-1, keepdims=True)
    e = jnp.exp(logits - m)
    probs = e / jnp.sum(e, axis=-1, keepdims=True)      # exact divide (user-facing)
    col0 = probs[:, 0:1]                                # torch.index_select(., 1, [0])
    cat = col0.reshape(C, B).T                          # [B, 4]
    cat_ref[...] = cat
    m2 = jnp.max(cat, axis=-1, keepdims=True)
    e2 = jnp.exp(cat - m2)
    sm_ref[...] = e2 / jnp.sum(e2, axis=-1, keepdims=True)   # exact divide (user-facing)


def bert_multi_choice(indices, segments, embeddings, params):
    """indices/segments: [4, B, S] int32; embeddings: (word, type, pos); params: 18 arrays."""
    C, B, S = indices.shape
    word_emb, type_emb, pos_emb = embeddings
    V, H = word_emb.shape
    F = params[8].shape[1]
    NB = C * B

    idx = indices.reshape(NB, S).astype(jnp.int32)
    seg = segments.reshape(NB, S, 1).astype(jnp.float32)
    enc_params = tuple(params[:16])
    wd, bd = params[16], params[17]

    def resident(arr):
        zeros = (0,) * arr.ndim
        return pl.BlockSpec(arr.shape, lambda nb, idx_ref: zeros)

    enc_in_specs = (
        [pl.BlockSpec((1, S, 1), lambda nb, idx_ref: (nb, 0, 0)),   # segments, per-seq tile
         pl.BlockSpec(memory_space=pl.ANY)]                         # word table stays in HBM
        + [resident(a) for a in (type_emb, pos_emb) + enc_params]   # resident weights
    )

    flops = int(NB * (6 * S * H * H + 4 * S * S * H + 2 * S * H * H
                      + 4 * S * H * F + 2 * H * H) + 4 * NB * H)
    transcendentals = int(NB * (S * S + S * F + H))
    bytes_accessed = int(idx.size * 4 + seg.size * 4 + NB * S * H * 4 + NB * H * 4
                         + sum(int(a.size) * a.dtype.itemsize
                               for a in (type_emb, pos_emb) + enc_params))

    pooled = pl.pallas_call(
        encoder_kernel,
        out_shape=jax.ShapeDtypeStruct((NB, 1, H), jnp.float32),
        grid_spec=pltpu.PrefetchScalarGridSpec(
            num_scalar_prefetch=1,
            grid=(NB,),
            in_specs=enc_in_specs,
            out_specs=pl.BlockSpec((1, 1, H), lambda nb, idx_ref: (nb, 0, 0)),
            scratch_shapes=[pltpu.VMEM((S, H), jnp.float32),
                            pltpu.SemaphoreType.DMA((S,))]),
        compiler_params=pltpu.CompilerParams(
            dimension_semantics=("parallel",),       # shards rows across v7x's 2 TCs
            vmem_limit_bytes=32 * 1024 * 1024),
        cost_estimate=pl.CostEstimate(flops=flops,
                                      transcendentals=transcendentals,
                                      bytes_accessed=bytes_accessed),
    )(idx, seg, word_emb, type_emb, pos_emb, *enc_params)

    cat, softmax = pl.pallas_call(
        head_kernel,
        out_shape=(jax.ShapeDtypeStruct((B, C), jnp.float32),
                   jax.ShapeDtypeStruct((B, C), jnp.float32)),
        in_specs=[pl.BlockSpec(memory_space=pltpu.MemorySpace.VMEM)] * 3,
        out_specs=(pl.BlockSpec(memory_space=pltpu.MemorySpace.VMEM),
                   pl.BlockSpec(memory_space=pltpu.MemorySpace.VMEM)),
        compiler_params=pltpu.CompilerParams(vmem_limit_bytes=32 * 1024 * 1024),
    )(pooled.reshape(NB, H), wd, bd)
    return cat, softmax


def make_params(key, hidden, ffn, vocab=64, seq=8):
    keys = jax.random.split(key, 11)
    s = 0.02

    def wf(k, shape):
        return s * jax.random.normal(k, shape, dtype=jnp.float32)

    att_scale = float(hidden) ** -0.5
    # fold the 1/sqrt(H) attention scale into the Q third of the fused QKV weight (+ bias)
    wqkv = jnp.concatenate([wf(keys[0], (hidden, hidden)) * att_scale,
                            wf(keys[1], (hidden, hidden)),
                            wf(keys[2], (hidden, hidden))], axis=1).astype(jnp.bfloat16)
    params = (
        jnp.ones((1, hidden), jnp.float32),                    # g_emb
        jnp.zeros((1, hidden), jnp.float32),                   # b_emb
        wqkv,                                                  # wqkv (bf16, q-scale folded)
        jnp.zeros((1, 3 * hidden), jnp.float32),               # bqkv (q-third would be scaled too)
        wf(keys[3], (hidden, hidden)).astype(jnp.bfloat16),    # wo
        jnp.zeros((1, hidden), jnp.float32),                   # bo
        jnp.ones((1, hidden), jnp.float32),                    # g1
        jnp.zeros((1, hidden), jnp.float32),                   # b1
        wf(keys[4], (hidden, ffn)).astype(jnp.bfloat16),       # w_ff1
        jnp.zeros((1, ffn), jnp.float32),                      # b_ff1
        wf(keys[5], (ffn, hidden)).astype(jnp.bfloat16),       # w_ff2
        jnp.zeros((1, hidden), jnp.float32),                   # b_ff2
        jnp.ones((1, hidden), jnp.float32),                    # g2
        jnp.zeros((1, hidden), jnp.float32),                   # b2
        wf(keys[6], (hidden, hidden)).astype(jnp.bfloat16),    # wp (pooler)
        jnp.zeros((1, hidden), jnp.float32),                   # bp
        wf(keys[7], (hidden, 2)).astype(jnp.bfloat16),         # wd (dense1: bert_dim -> 2)
        jnp.zeros((1, 2), jnp.float32),                        # bd
    )
    embeddings = (
        wf(keys[8], (vocab, hidden)),                          # word embeddings (f32, gathered)
        wf(keys[9], (2, hidden)),                              # token-type embeddings (f32)
        wf(keys[10], (seq, hidden)),                           # position embeddings (f32)
    )
    return params, embeddings


if __name__ == "__main__":
    B, S, H, FFN = 2, 8, 32, 128
    key = jax.random.PRNGKey(0)
    k_par, k_ids, k_seg = jax.random.split(key, 3)

    params, embeddings = make_params(k_par, H, FFN, vocab=64, seq=S)

    # inputs[0..7]: (a_indices, a_segments, b_indices, b_segments, ...)
    all_indices = jax.random.randint(k_ids, (NUM_CHOICES, B, S), 0, 64, dtype=jnp.int32)
    all_segments = jax.random.randint(k_seg, (NUM_CHOICES, B, S), 0, 2, dtype=jnp.int32)

    cat, softmax = bert_multi_choice(all_indices, all_segments, embeddings, params)
    cat, softmax = jax.block_until_ready((cat, softmax))

    assert cat.shape == (B, NUM_CHOICES) and softmax.shape == (B, NUM_CHOICES)
    assert bool(jnp.all(jnp.isfinite(cat))) and bool(jnp.all(jnp.isfinite(softmax)))
    # TODO(synk): nn.Dropout randomness (training mode) is not reproduced; inference
    # (identity) semantics are used, and the external pretrained `bert` is replaced by
    # a deterministic 1-layer synthetic encoder with the same pooled-output interface.
    print("KERNEL_OK")
</pallas_src>

<mosaic_0001>
module attributes {stable_mosaic.version = 11 : i64} {
  func.func @encoder_kernel(%arg0: i32, %arg1: memref<8x8xi32, #tpu.memory_space<smem>>, %arg2: memref<1x8x1xf32, #tpu.memory_space<vmem>>, %arg3: memref<64x32xf32, #tpu.memory_space<any>>, %arg4: memref<2x32xf32, #tpu.memory_space<vmem>>, %arg5: memref<8x32xf32, #tpu.memory_space<vmem>>, %arg6: memref<1x32xf32, #tpu.memory_space<vmem>>, %arg7: memref<1x32xf32, #tpu.memory_space<vmem>>, %arg8: memref<32x96xbf16, #tpu.memory_space<vmem>>, %arg9: memref<1x96xf32, #tpu.memory_space<vmem>>, %arg10: memref<32x32xbf16, #tpu.memory_space<vmem>>, %arg11: memref<1x32xf32, #tpu.memory_space<vmem>>, %arg12: memref<1x32xf32, #tpu.memory_space<vmem>>, %arg13: memref<1x32xf32, #tpu.memory_space<vmem>>, %arg14: memref<32x128xbf16, #tpu.memory_space<vmem>>, %arg15: memref<1x128xf32, #tpu.memory_space<vmem>>, %arg16: memref<128x32xbf16, #tpu.memory_space<vmem>>, %arg17: memref<1x32xf32, #tpu.memory_space<vmem>>, %arg18: memref<1x32xf32, #tpu.memory_space<vmem>>, %arg19: memref<1x32xf32, #tpu.memory_space<vmem>>, %arg20: memref<32x32xbf16, #tpu.memory_space<vmem>>, %arg21: memref<1x32xf32, #tpu.memory_space<vmem>>, %arg22: memref<1x1x32xf32, #tpu.memory_space<vmem>>, %arg23: memref<8x32xf32, #tpu.memory_space<vmem>>, %arg24: memref<8x!tpu.dma_semaphore, #tpu.memory_space<semaphore_mem>>) attributes {dimension_semantics = [#tpu.dimension_semantics<parallel>], iteration_bounds = array<i64: 8>, scalar_prefetch = 1 : i64, scratch_operands = 2 : i64, tpu.core_type = #tpu.core_type<tc>, window_params = [{transform_indices = @transform_0, window_bounds = array<i64: 1, 8, 1>}, {}, {pipeline_mode = #tpu.pipeline_mode<synchronous>, transform_indices = @transform_2, window_bounds = array<i64: 2, 32>}, {pipeline_mode = #tpu.pipeline_mode<synchronous>, transform_indices = @transform_3, window_bounds = array<i64: 8, 32>}, {pipeline_mode = #tpu.pipeline_mode<synchronous>, transform_indices = @transform_4, window_bounds = array<i64: 1, 32>}, {pipeline_mode = #tpu.pipeline_mode<synchronous>, transform_indices = @transform_5, window_bounds = array<i64: 1, 32>}, {pipeline_mode = #tpu.pipeline_mode<synchronous>, transform_indices = @transform_6, window_bounds = array<i64: 32, 96>}, {pipeline_mode = #tpu.pipeline_mode<synchronous>, transform_indices = @transform_7, window_bounds = array<i64: 1, 96>}, {pipeline_mode = #tpu.pipeline_mode<synchronous>, transform_indices = @transform_8, window_bounds = array<i64: 32, 32>}, {pipeline_mode = #tpu.pipeline_mode<synchronous>, transform_indices = @transform_9, window_bounds = array<i64: 1, 32>}, {pipeline_mode = #tpu.pipeline_mode<synchronous>, transform_indices = @transform_10, window_bounds = array<i64: 1, 32>}, {pipeline_mode = #tpu.pipeline_mode<synchronous>, transform_indices = @transform_11, window_bounds = array<i64: 1, 32>}, {pipeline_mode = #tpu.pipeline_mode<synchronous>, transform_indices = @transform_12, window_bounds = array<i64: 32, 128>}, {pipeline_mode = #tpu.pipeline_mode<synchronous>, transform_indices = @transform_13, window_bounds = array<i64: 1, 128>}, {pipeline_mode = #tpu.pipeline_mode<synchronous>, transform_indices = @transform_14, window_bounds = array<i64: 128, 32>}, {pipeline_mode = #tpu.pipeline_mode<synchronous>, transform_indices = @transform_15, window_bounds = array<i64: 1, 32>}, {pipeline_mode = #tpu.pipeline_mode<synchronous>, transform_indices = @transform_16, window_bounds = array<i64: 1, 32>}, {pipeline_mode = #tpu.pipeline_mode<synchronous>, transform_indices = @transform_17, window_bounds = array<i64: 1, 32>}, {pipeline_mode = #tpu.pipeline_mode<synchronous>, transform_indices = @transform_18, window_bounds = array<i64: 32, 32>}, {pipeline_mode = #tpu.pipeline_mode<synchronous>, transform_indices = @transform_19, window_bounds = array<i64: 1, 32>}, {transform_indices = @transform_20, window_bounds = array<i64: 1, 1, 32>}]} {
    %0 = arith.index_cast %arg0 : i32 to index
    %c0 = arith.constant 0 : index
    %1 = memref.load %arg1[%0, %c0] : memref<8x8xi32, #tpu.memory_space<smem>>
    %c0_i32 = arith.constant 0 : i32
    %c0_i32_0 = arith.constant 0 : i32
    %2 = tpu.memref_slice %arg3[%1, %c0_i32_0] : memref<64x32xf32, #tpu.memory_space<any>> -> memref<1x32xf32, #tpu.memory_space<any>>
    %c0_i32_1 = arith.constant 0 : i32
    %c0_i32_2 = arith.constant 0 : i32
    %3 = tpu.memref_slice %arg23[%c0_i32_1, %c0_i32_2] : memref<8x32xf32, #tpu.memory_space<vmem>> -> memref<1x32xf32, #tpu.memory_space<vmem>>
    %4 = tpu.memref_slice %arg24[%c0_i32] : memref<8x!tpu.dma_semaphore, #tpu.memory_space<semaphore_mem>> -> memref<1x!tpu.dma_semaphore, #tpu.memory_space<semaphore_mem>>
    %5 = tpu.memref_squeeze %4 : memref<1x!tpu.dma_semaphore, #tpu.memory_space<semaphore_mem>> -> memref<!tpu.dma_semaphore, #tpu.memory_space<semaphore_mem>>
    tpu.enqueue_dma source(%2 : memref<1x32xf32, #tpu.memory_space<any>>) target(%3 : memref<1x32xf32, #tpu.memory_space<vmem>>) target_semaphore(%5 : memref<!tpu.dma_semaphore, #tpu.memory_space<semaphore_mem>>)
    %6 = arith.index_cast %arg0 : i32 to index
    %c1 = arith.constant 1 : index
    %7 = memref.load %arg1[%6, %c1] : memref<8x8xi32, #tpu.memory_space<smem>>
    %c1_i32 = arith.constant 1 : i32
    %c0_i32_3 = arith.constant 0 : i32
    %8 = tpu.memref_slice %arg3[%7, %c0_i32_3] : memref<64x32xf32, #tpu.memory_space<any>> -> memref<1x32xf32, #tpu.memory_space<any>>
    %c1_i32_4 = arith.constant 1 : i32
    %c0_i32_5 = arith.constant 0 : i32
    %9 = tpu.memref_slice %arg23[%c1_i32_4, %c0_i32_5] : memref<8x32xf32, #tpu.memory_space<vmem>> -> memref<1x32xf32, #tpu.memory_space<vmem>>
    %10 = tpu.memref_slice %arg24[%c1_i32] : memref<8x!tpu.dma_semaphore, #tpu.memory_space<semaphore_mem>> -> memref<1x!tpu.dma_semaphore, #tpu.memory_space<semaphore_mem>>
    %11 = tpu.memref_squeeze %10 : memref<1x!tpu.dma_semaphore, #tpu.memory_space<semaphore_mem>> -> memref<!tpu.dma_semaphore, #tpu.memory_space<semaphore_mem>>
    tpu.enqueue_dma source(%8 : memref<1x32xf32, #tpu.memory_space<any>>) target(%9 : memref<1x32xf32, #tpu.memory_space<vmem>>) target_semaphore(%11 : memref<!tpu.dma_semaphore, #tpu.memory_space<semaphore_mem>>)
    %12 = arith.index_cast %arg0 : i32 to index
    %c2 = arith.constant 2 : index
    %13 = memref.load %arg1[%12, %c2] : memref<8x8xi32, #tpu.memory_space<smem>>
    %c2_i32 = arith.constant 2 : i32
    %c0_i32_6 = arith.constant 0 : i32
    %14 = tpu.memref_slice %arg3[%13, %c0_i32_6] : memref<64x32xf32, #tpu.memory_space<any>> -> memref<1x32xf32, #tpu.memory_space<any>>
    %c2_i32_7 = arith.constant 2 : i32
    %c0_i32_8 = arith.constant 0 : i32
    %15 = tpu.memref_slice %arg23[%c2_i32_7, %c0_i32_8] : memref<8x32xf32, #tpu.memory_space<vmem>> -> memref<1x32xf32, #tpu.memory_space<vmem>>
    %16 = tpu.memref_slice %arg24[%c2_i32] : memref<8x!tpu.dma_semaphore, #tpu.memory_space<semaphore_mem>> -> memref<1x!tpu.dma_semaphore, #tpu.memory_space<semaphore_mem>>
    %17 = tpu.memref_squeeze %16 : memref<1x!tpu.dma_semaphore, #tpu.memory_space<semaphore_mem>> -> memref<!tpu.dma_semaphore, #tpu.memory_space<semaphore_mem>>
    tpu.enqueue_dma source(%14 : memref<1x32xf32, #tpu.memory_space<any>>) target(%15 : memref<1x32xf32, #tpu.memory_space<vmem>>) target_semaphore(%17 : memref<!tpu.dma_semaphore, #tpu.memory_space<semaphore_mem>>)
    %18 = arith.index_cast %arg0 : i32 to index
    %c3 = arith.constant 3 : index
    %19 = memref.load %arg1[%18, %c3] : memref<8x8xi32, #tpu.memory_space<smem>>
    %c3_i32 = arith.constant 3 : i32
    %c0_i32_9 = arith.constant 0 : i32
    %20 = tpu.memref_slice %arg3[%19, %c0_i32_9] : memref<64x32xf32, #tpu.memory_space<any>> -> memref<1x32xf32, #tpu.memory_space<any>>
    %c3_i32_10 = arith.constant 3 : i32
    %c0_i32_11 = arith.constant 0 : i32
    %21 = tpu.memref_slice %arg23[%c3_i32_10, %c0_i32_11] : memref<8x32xf32, #tpu.memory_space<vmem>> -> memref<1x32xf32, #tpu.memory_space<vmem>>
    %22 = tpu.memref_slice %arg24[%c3_i32] : memref<8x!tpu.dma_semaphore, #tpu.memory_space<semaphore_mem>> -> memref<1x!tpu.dma_semaphore, #tpu.memory_space<semaphore_mem>>
    %23 = tpu.memref_squeeze %22 : memref<1x!tpu.dma_semaphore, #tpu.memory_space<semaphore_mem>> -> memref<!tpu.dma_semaphore, #tpu.memory_space<semaphore_mem>>
    tpu.enqueue_dma source(%20 : memref<1x32xf32, #tpu.memory_space<any>>) target(%21 : memref<1x32xf32, #tpu.memory_space<vmem>>) target_semaphore(%23 : memref<!tpu.dma_semaphore, #tpu.memory_space<semaphore_mem>>)
    %24 = arith.index_cast %arg0 : i32 to index
    %c4 = arith.constant 4 : index
    %25 = memref.load %arg1[%24, %c4] : memref<8x8xi32, #tpu.memory_space<smem>>
    %c4_i32 = arith.constant 4 : i32
    %c0_i32_12 = arith.constant 0 : i32
    %26 = tpu.memref_slice %arg3[%25, %c0_i32_12] : memref<64x32xf32, #tpu.memory_space<any>> -> memref<1x32xf32, #tpu.memory_space<any>>
    %c4_i32_13 = arith.constant 4 : i32
    %c0_i32_14 = arith.constant 0 : i32
    %27 = tpu.memref_slice %arg23[%c4_i32_13, %c0_i32_14] : memref<8x32xf32, #tpu.memory_space<vmem>> -> memref<1x32xf32, #tpu.memory_space<vmem>>
    %28 = tpu.memref_slice %arg24[%c4_i32] : memref<8x!tpu.dma_semaphore, #tpu.memory_space<semaphore_mem>> -> memref<1x!tpu.dma_semaphore, #tpu.memory_space<semaphore_mem>>
    %29 = tpu.memref_squeeze %28 : memref<1x!tpu.dma_semaphore, #tpu.memory_space<semaphore_mem>> -> memref<!tpu.dma_semaphore, #tpu.memory_space<semaphore_mem>>
    tpu.enqueue_dma source(%26 : memref<1x32xf32, #tpu.memory_space<any>>) target(%27 : memref<1x32xf32, #tpu.memory_space<vmem>>) target_semaphore(%29 : memref<!tpu.dma_semaphore, #tpu.memory_space<semaphore_mem>>)
    %30 = arith.index_cast %arg0 : i32 to index
    %c5 = arith.constant 5 : index
    %31 = memref.load %arg1[%30, %c5] : memref<8x8xi32, #tpu.memory_space<smem>>
    %c5_i32 = arith.constant 5 : i32
    %c0_i32_15 = arith.constant 0 : i32
    %32 = tpu.memref_slice %arg3[%31, %c0_i32_15] : memref<64x32xf32, #tpu.memory_space<any>> -> memref<1x32xf32, #tpu.memory_space<any>>
    %c5_i32_16 = arith.constant 5 : i32
    %c0_i32_17 = arith.constant 0 : i32
    %33 = tpu.memref_slice %arg23[%c5_i32_16, %c0_i32_17] : memref<8x32xf32, #tpu.memory_space<vmem>> -> memref<1x32xf32, #tpu.memory_space<vmem>>
    %34 = tpu.memref_slice %arg24[%c5_i32] : memref<8x!tpu.dma_semaphore, #tpu.memory_space<semaphore_mem>> -> memref<1x!tpu.dma_semaphore, #tpu.memory_space<semaphore_mem>>
    %35 = tpu.memref_squeeze %34 : memref<1x!tpu.dma_semaphore, #tpu.memory_space<semaphore_mem>> -> memref<!tpu.dma_semaphore, #tpu.memory_space<semaphore_mem>>
    tpu.enqueue_dma source(%32 : memref<1x32xf32, #tpu.memory_space<any>>) target(%33 : memref<1x32xf32, #tpu.memory_space<vmem>>) target_semaphore(%35 : memref<!tpu.dma_semaphore, #tpu.memory_space<semaphore_mem>>)
    %36 = arith.index_cast %arg0 : i32 to index
    %c6 = arith.constant 6 : index
    %37 = memref.load %arg1[%36, %c6] : memref<8x8xi32, #tpu.memory_space<smem>>
    %c6_i32 = arith.constant 6 : i32
    %c0_i32_18 = arith.constant 0 : i32
    %38 = tpu.memref_slice %arg3[%37, %c0_i32_18] : memref<64x32xf32, #tpu.memory_space<any>> -> memref<1x32xf32, #tpu.memory_space<any>>
    %c6_i32_19 = arith.constant 6 : i32
    %c0_i32_20 = arith.constant 0 : i32
    %39 = tpu.memref_slice %arg23[%c6_i32_19, %c0_i32_20] : memref<8x32xf32, #tpu.memory_space<vmem>> -> memref<1x32xf32, #tpu.memory_space<vmem>>
    %40 = tpu.memref_slice %arg24[%c6_i32] : memref<8x!tpu.dma_semaphore, #tpu.memory_space<semaphore_mem>> -> memref<1x!tpu.dma_semaphore, #tpu.memory_space<semaphore_mem>>
    %41 = tpu.memref_squeeze %40 : memref<1x!tpu.dma_semaphore, #tpu.memory_space<semaphore_mem>> -> memref<!tpu.dma_semaphore, #tpu.memory_space<semaphore_mem>>
    tpu.enqueue_dma source(%38 : memref<1x32xf32, #tpu.memory_space<any>>) target(%39 : memref<1x32xf32, #tpu.memory_space<vmem>>) target_semaphore(%41 : memref<!tpu.dma_semaphore, #tpu.memory_space<semaphore_mem>>)
    %42 = arith.index_cast %arg0 : i32 to index
    %c7 = arith.constant 7 : index
    %43 = memref.load %arg1[%42, %c7] : memref<8x8xi32, #tpu.memory_space<smem>>
    %c7_i32 = arith.constant 7 : i32
    %c0_i32_21 = arith.constant 0 : i32
    %44 = tpu.memref_slice %arg3[%43, %c0_i32_21] : memref<64x32xf32, #tpu.memory_space<any>> -> memref<1x32xf32, #tpu.memory_space<any>>
    %c7_i32_22 = arith.constant 7 : i32
    %c0_i32_23 = arith.constant 0 : i32
    %45 = tpu.memref_slice %arg23[%c7_i32_22, %c0_i32_23] : memref<8x32xf32, #tpu.memory_space<vmem>> -> memref<1x32xf32, #tpu.memory_space<vmem>>
    %46 = tpu.memref_slice %arg24[%c7_i32] : memref<8x!tpu.dma_semaphore, #tpu.memory_space<semaphore_mem>> -> memref<1x!tpu.dma_semaphore, #tpu.memory_space<semaphore_mem>>
    %47 = tpu.memref_squeeze %46 : memref<1x!tpu.dma_semaphore, #tpu.memory_space<semaphore_mem>> -> memref<!tpu.dma_semaphore, #tpu.memory_space<semaphore_mem>>
    tpu.enqueue_dma source(%44 : memref<1x32xf32, #tpu.memory_space<any>>) target(%45 : memref<1x32xf32, #tpu.memory_space<vmem>>) target_semaphore(%47 : memref<!tpu.dma_semaphore, #tpu.memory_space<semaphore_mem>>)
    %c0_i32_24 = arith.constant 0 : i32
    %c0_i32_25 = arith.constant 0 : i32
    %48 = tpu.memref_slice %arg3[%1, %c0_i32_25] : memref<64x32xf32, #tpu.memory_space<any>> -> memref<1x32xf32, #tpu.memory_space<any>>
    %c0_i32_26 = arith.constant 0 : i32
    %c0_i32_27 = arith.constant 0 : i32
    %49 = tpu.memref_slice %arg23[%c0_i32_26, %c0_i32_27] : memref<8x32xf32, #tpu.memory_space<vmem>> -> memref<1x32xf32, #tpu.memory_space<vmem>>
    %50 = tpu.memref_slice %arg24[%c0_i32_24] : memref<8x!tpu.dma_semaphore, #tpu.memory_space<semaphore_mem>> -> memref<1x!tpu.dma_semaphore, #tpu.memory_space<semaphore_mem>>
    %51 = tpu.memref_squeeze %50 : memref<1x!tpu.dma_semaphore, #tpu.memory_space<semaphore_mem>> -> memref<!tpu.dma_semaphore, #tpu.memory_space<semaphore_mem>>
    tpu.wait_dma2 semaphore(%51 : memref<!tpu.dma_semaphore, #tpu.memory_space<semaphore_mem>>) src(%48 : memref<1x32xf32, #tpu.memory_space<any>>) dst(%49 : memref<1x32xf32, #tpu.memory_space<vmem>>)
    %c1_i32_28 = arith.constant 1 : i32
    %c0_i32_29 = arith.constant 0 : i32
    %52 = tpu.memref_slice %arg3[%7, %c0_i32_29] : memref<64x32xf32, #tpu.memory_space<any>> -> memref<1x32xf32, #tpu.memory_space<any>>
    %c1_i32_30 = arith.constant 1 : i32
    %c0_i32_31 = arith.constant 0 : i32
    %53 = tpu.memref_slice %arg23[%c1_i32_30, %c0_i32_31] : memref<8x32xf32, #tpu.memory_space<vmem>> -> memref<1x32xf32, #tpu.memory_space<vmem>>
    %54 = tpu.memref_slice %arg24[%c1_i32_28] : memref<8x!tpu.dma_semaphore, #tpu.memory_space<semaphore_mem>> -> memref<1x!tpu.dma_semaphore, #tpu.memory_space<semaphore_mem>>
    %55 = tpu.memref_squeeze %54 : memref<1x!tpu.dma_semaphore, #tpu.memory_space<semaphore_mem>> -> memref<!tpu.dma_semaphore, #tpu.memory_space<semaphore_mem>>
    tpu.wait_dma2 semaphore(%55 : memref<!tpu.dma_semaphore, #tpu.memory_space<semaphore_mem>>) src(%52 : memref<1x32xf32, #tpu.memory_space<any>>) dst(%53 : memref<1x32xf32, #tpu.memory_space<vmem>>)
    %c2_i32_32 = arith.constant 2 : i32
    %c0_i32_33 = arith.constant 0 : i32
    %56 = tpu.memref_slice %arg3[%13, %c0_i32_33] : memref<64x32xf32, #tpu.memory_space<any>> -> memref<1x32xf32, #tpu.memory_space<any>>
    %c2_i32_34 = arith.constant 2 : i32
    %c0_i32_35 = arith.constant 0 : i32
    %57 = tpu.memref_slice %arg23[%c2_i32_34, %c0_i32_35] : memref<8x32xf32, #tpu.memory_space<vmem>> -> memref<1x32xf32, #tpu.memory_space<vmem>>
    %58 = tpu.memref_slice %arg24[%c2_i32_32] : memref<8x!tpu.dma_semaphore, #tpu.memory_space<semaphore_mem>> -> memref<1x!tpu.dma_semaphore, #tpu.memory_space<semaphore_mem>>
    %59 = tpu.memref_squeeze %58 : memref<1x!tpu.dma_semaphore, #tpu.memory_space<semaphore_mem>> -> memref<!tpu.dma_semaphore, #tpu.memory_space<semaphore_mem>>
    tpu.wait_dma2 semaphore(%59 : memref<!tpu.dma_semaphore, #tpu.memory_space<semaphore_mem>>) src(%56 : memref<1x32xf32, #tpu.memory_space<any>>) dst(%57 : memref<1x32xf32, #tpu.memory_space<vmem>>)
    %c3_i32_36 = arith.constant 3 : i32
    %c0_i32_37 = arith.constant 0 : i32
    %60 = tpu.memref_slice %arg3[%19, %c0_i32_37] : memref<64x32xf32, #tpu.memory_space<any>> -> memref<1x32xf32, #tpu.memory_space<any>>
    %c3_i32_38 = arith.constant 3 : i32
    %c0_i32_39 = arith.constant 0 : i32
    %61 = tpu.memref_slice %arg23[%c3_i32_38, %c0_i32_39] : memref<8x32xf32, #tpu.memory_space<vmem>> -> memref<1x32xf32, #tpu.memory_space<vmem>>
    %62 = tpu.memref_slice %arg24[%c3_i32_36] : memref<8x!tpu.dma_semaphore, #tpu.memory_space<semaphore_mem>> -> memref<1x!tpu.dma_semaphore, #tpu.memory_space<semaphore_mem>>
    %63 = tpu.memref_squeeze %62 : memref<1x!tpu.dma_semaphore, #tpu.memory_space<semaphore_mem>> -> memref<!tpu.dma_semaphore, #tpu.memory_space<semaphore_mem>>
    tpu.wait_dma2 semaphore(%63 : memref<!tpu.dma_semaphore, #tpu.memory_space<semaphore_mem>>) src(%60 : memref<1x32xf32, #tpu.memory_space<any>>) dst(%61 : memref<1x32xf32, #tpu.memory_space<vmem>>)
    %c4_i32_40 = arith.constant 4 : i32
    %c0_i32_41 = arith.constant 0 : i32
    %64 = tpu.memref_slice %arg3[%25, %c0_i32_41] : memref<64x32xf32, #tpu.memory_space<any>> -> memref<1x32xf32, #tpu.memory_space<any>>
    %c4_i32_42 = arith.constant 4 : i32
    %c0_i32_43 = arith.constant 0 : i32
    %65 = tpu.memref_slice %arg23[%c4_i32_42, %c0_i32_43] : memref<8x32xf32, #tpu.memory_space<vmem>> -> memref<1x32xf32, #tpu.memory_space<vmem>>
    %66 = tpu.memref_slice %arg24[%c4_i32_40] : memref<8x!tpu.dma_semaphore, #tpu.memory_space<semaphore_mem>> -> memref<1x!tpu.dma_semaphore, #tpu.memory_space<semaphore_mem>>
    %67 = tpu.memref_squeeze %66 : memref<1x!tpu.dma_semaphore, #tpu.memory_space<semaphore_mem>> -> memref<!tpu.dma_semaphore, #tpu.memory_space<semaphore_mem>>
    tpu.wait_dma2 semaphore(%67 : memref<!tpu.dma_semaphore, #tpu.memory_space<semaphore_mem>>) src(%64 : memref<1x32xf32, #tpu.memory_space<any>>) dst(%65 : memref<1x32xf32, #tpu.memory_space<vmem>>)
    %c5_i32_44 = arith.constant 5 : i32
    %c0_i32_45 = arith.constant 0 : i32
    %68 = tpu.memref_slice %arg3[%31, %c0_i32_45] : memref<64x32xf32, #tpu.memory_space<any>> -> memref<1x32xf32, #tpu.memory_space<any>>
    %c5_i32_46 = arith.constant 5 : i32
    %c0_i32_47 = arith.constant 0 : i32
    %69 = tpu.memref_slice %arg23[%c5_i32_46, %c0_i32_47] : memref<8x32xf32, #tpu.memory_space<vmem>> -> memref<1x32xf32, #tpu.memory_space<vmem>>
    %70 = tpu.memref_slice %arg24[%c5_i32_44] : memref<8x!tpu.dma_semaphore, #tpu.memory_space<semaphore_mem>> -> memref<1x!tpu.dma_semaphore, #tpu.memory_space<semaphore_mem>>
    %71 = tpu.memref_squeeze %70 : memref<1x!tpu.dma_semaphore, #tpu.memory_space<semaphore_mem>> -> memref<!tpu.dma_semaphore, #tpu.memory_space<semaphore_mem>>
    tpu.wait_dma2 semaphore(%71 : memref<!tpu.dma_semaphore, #tpu.memory_space<semaphore_mem>>) src(%68 : memref<1x32xf32, #tpu.memory_space<any>>) dst(%69 : memref<1x32xf32, #tpu.memory_space<vmem>>)
    %c6_i32_48 = arith.constant 6 : i32
    %c0_i32_49 = arith.constant 0 : i32
    %72 = tpu.memref_slice %arg3[%37, %c0_i32_49] : memref<64x32xf32, #tpu.memory_space<any>> -> memref<1x32xf32, #tpu.memory_space<any>>
    %c6_i32_50 = arith.constant 6 : i32
    %c0_i32_51 = arith.constant 0 : i32
    %73 = tpu.memref_slice %arg23[%c6_i32_50, %c0_i32_51] : memref<8x32xf32, #tpu.memory_space<vmem>> -> memref<1x32xf32, #tpu.memory_space<vmem>>
    %74 = tpu.memref_slice %arg24[%c6_i32_48] : memref<8x!tpu.dma_semaphore, #tpu.memory_space<semaphore_mem>> -> memref<1x!tpu.dma_semaphore, #tpu.memory_space<semaphore_mem>>
    %75 = tpu.memref_squeeze %74 : memref<1x!tpu.dma_semaphore, #tpu.memory_space<semaphore_mem>> -> memref<!tpu.dma_semaphore, #tpu.memory_space<semaphore_mem>>
    tpu.wait_dma2 semaphore(%75 : memref<!tpu.dma_semaphore, #tpu.memory_space<semaphore_mem>>) src(%72 : memref<1x32xf32, #tpu.memory_space<any>>) dst(%73 : memref<1x32xf32, #tpu.memory_space<vmem>>)
    %c7_i32_52 = arith.constant 7 : i32
    %c0_i32_53 = arith.constant 0 : i32
    %76 = tpu.memref_slice %arg3[%43, %c0_i32_53] : memref<64x32xf32, #tpu.memory_space<any>> -> memref<1x32xf32, #tpu.memory_space<any>>
    %c7_i32_54 = arith.constant 7 : i32
    %c0_i32_55 = arith.constant 0 : i32
    %77 = tpu.memref_slice %arg23[%c7_i32_54, %c0_i32_55] : memref<8x32xf32, #tpu.memory_space<vmem>> -> memref<1x32xf32, #tpu.memory_space<vmem>>
    %78 = tpu.memref_slice %arg24[%c7_i32_52] : memref<8x!tpu.dma_semaphore, #tpu.memory_space<semaphore_mem>> -> memref<1x!tpu.dma_semaphore, #tpu.memory_space<semaphore_mem>>
    %79 = tpu.memref_squeeze %78 : memref<1x!tpu.dma_semaphore, #tpu.memory_space<semaphore_mem>> -> memref<!tpu.dma_semaphore, #tpu.memory_space<semaphore_mem>>
    tpu.wait_dma2 semaphore(%79 : memref<!tpu.dma_semaphore, #tpu.memory_space<semaphore_mem>>) src(%76 : memref<1x32xf32, #tpu.memory_space<any>>) dst(%77 : memref<1x32xf32, #tpu.memory_space<vmem>>)
    %c0_56 = arith.constant 0 : index
    %c0_57 = arith.constant 0 : index
    %80 = vector.load %arg23[%c0_56, %c0_57] : memref<8x32xf32, #tpu.memory_space<vmem>>, vector<8x32xf32>
    %c0_58 = arith.constant 0 : index
    %c0_59 = arith.constant 0 : index
    %c0_60 = arith.constant 0 : index
    %81 = vector.load %arg2[%c0_58, %c0_59, %c0_60] : memref<1x8x1xf32, #tpu.memory_space<vmem>>, vector<1x8x1xf32>
    %82 = vector.shape_cast %81 : vector<1x8x1xf32> to vector<8x1xf32>
    %c0_61 = arith.constant 0 : index
    %c0_62 = arith.constant 0 : index
    %83 = vector.load %arg4[%c0_61, %c0_62] : memref<2x32xf32, #tpu.memory_space<vmem>>, vector<1x32xf32>
    %c1_63 = arith.constant 1 : index
    %c0_64 = arith.constant 0 : index
    %84 = vector.load %arg4[%c1_63, %c0_64] : memref<2x32xf32, #tpu.memory_space<vmem>>, vector<1x32xf32>
    %85 = arith.subf %84, %83 : vector<1x32xf32>
    %86 = vector.broadcast %82 : vector<8x1xf32> to vector<8x32xf32>
    %87 = vector.broadcast %85 : vector<1x32xf32> to vector<8x32xf32>
    %88 = arith.mulf %86, %87 : vector<8x32xf32>
    %89 = vector.broadcast %83 : vector<1x32xf32> to vector<8x32xf32>
    %90 = arith.addf %89, %88 : vector<8x32xf32>
    %91 = arith.addf %80, %90 : vector<8x32xf32>
    %c0_65 = arith.constant 0 : index
    %c0_66 = arith.constant 0 : index
    %92 = vector.load %arg5[%c0_65, %c0_66] : memref<8x32xf32, #tpu.memory_space<vmem>>, vector<8x32xf32>
    %93 = arith.addf %91, %92 : vector<8x32xf32>
    %c0_67 = arith.constant 0 : index
    %c0_68 = arith.constant 0 : index
    %94 = vector.load %arg6[%c0_67, %c0_68] : memref<1x32xf32, #tpu.memory_space<vmem>>, vector<1x32xf32>
    %c0_69 = arith.constant 0 : index
    %c0_70 = arith.constant 0 : index
    %95 = vector.load %arg7[%c0_69, %c0_70] : memref<1x32xf32, #tpu.memory_space<vmem>>, vector<1x32xf32>
    %cst = arith.constant dense<0.000000e+00> : vector<8xf32>
    %96 = vector.multi_reduction <add>, %93, %cst [1] : vector<8x32xf32> to vector<8xf32>
    %97 = vector.shape_cast %96 : vector<8xf32> to vector<8x1xf32>
    %cst_71 = arith.constant 3.200000e+01 : f32
    %98 = vector.broadcast %cst_71 : f32 to vector<8x1xf32>
    %99 = arith.divf %97, %98 : vector<8x1xf32>
    %100 = vector.broadcast %99 : vector<8x1xf32> to vector<8x32xf32>
    %101 = arith.subf %93, %100 : vector<8x32xf32>
    %102 = arith.mulf %101, %101 : vector<8x32xf32>
    %cst_72 = arith.constant dense<0.000000e+00> : vector<8xf32>
    %103 = vector.multi_reduction <add>, %102, %cst_72 [1] : vector<8x32xf32> to vector<8xf32>
    %104 = vector.shape_cast %103 : vector<8xf32> to vector<8x1xf32>
    %cst_73 = arith.constant 3.200000e+01 : f32
    %105 = vector.broadcast %cst_73 : f32 to vector<8x1xf32>
    %106 = arith.divf %104, %105 : vector<8x1xf32>
    %107 = vector.broadcast %99 : vector<8x1xf32> to vector<8x32xf32>
    %108 = arith.subf %93, %107 : vector<8x32xf32>
    %cst_74 = arith.constant 9.99999996E-13 : f32
    %109 = vector.broadcast %cst_74 : f32 to vector<8x1xf32>
    %110 = arith.addf %106, %109 : vector<8x1xf32>
    %111 = math.rsqrt %110 : vector<8x1xf32>
    %112 = vector.broadcast %111 : vector<8x1xf32> to vector<8x32xf32>
    %113 = arith.mulf %108, %112 : vector<8x32xf32>
    %114 = vector.broadcast %94 : vector<1x32xf32> to vector<8x32xf32>
    %115 = arith.mulf %113, %114 : vector<8x32xf32>
    %116 = vector.broadcast %95 : vector<1x32xf32> to vector<8x32xf32>
    %117 = arith.addf %115, %116 : vector<8x32xf32>
    %118 = arith.truncf %117 : vector<8x32xf32> to vector<8x32xbf16>
    %c0_75 = arith.constant 0 : index
    %c0_76 = arith.constant 0 : index
    %119 = vector.load %arg8[%c0_75, %c0_76] : memref<32x96xbf16, #tpu.memory_space<vmem>>, vector<32x96xbf16>
    %cst_77 = arith.constant dense<0.000000e+00> : vector<8x96xf32>
    %120 = tpu.matmul %118, %119, %cst_77 {dimension_numbers = #tpu.dot_dimension_numbers<[1], [0], [0], [1], [0, 0, 1, 1], [], []>} : vector<8x32xbf16>, vector<32x96xbf16>, vector<8x96xf32> -> vector<8x96xf32>
    %c0_78 = arith.constant 0 : index
    %c0_79 = arith.constant 0 : index
    %121 = vector.load %arg9[%c0_78, %c0_79] : memref<1x96xf32, #tpu.memory_space<vmem>>, vector<1x96xf32>
    %122 = vector.broadcast %121 : vector<1x96xf32> to vector<8x96xf32>
    %123 = arith.addf %120, %122 : vector<8x96xf32>
    %124 = vector.extract_strided_slice %123 {offsets = [0, 0], sizes = [8, 32], strides = [1, 1]} : vector<8x96xf32> to vector<8x32xf32>
    %125 = arith.truncf %124 : vector<8x32xf32> to vector<8x32xbf16>
    %126 = vector.extract_strided_slice %123 {offsets = [0, 32], sizes = [8, 32], strides = [1, 1]} : vector<8x96xf32> to vector<8x32xf32>
    %127 = arith.truncf %126 : vector<8x32xf32> to vector<8x32xbf16>
    %128 = vector.extract_strided_slice %123 {offsets = [0, 64], sizes = [8, 32], strides = [1, 1]} : vector<8x96xf32> to vector<8x32xf32>
    %129 = arith.truncf %128 : vector<8x32xf32> to vector<8x32xbf16>
    %130 = tpu.transpose %127, [1, 0] : vector<8x32xbf16> -> vector<32x8xbf16>
    %cst_80 = arith.constant dense<0.000000e+00> : vector<8x8xf32>
    %131 = tpu.matmul %125, %130, %cst_80 {dimension_numbers = #tpu.dot_dimension_numbers<[1], [0], [0], [1], [0, 0, 1, 1], [], []>} : vector<8x32xbf16>, vector<32x8xbf16>, vector<8x8xf32> -> vector<8x8xf32>
    %cst_81 = arith.constant dense<0xFF800000> : vector<8xf32>
    %132 = vector.multi_reduction <maximumf>, %131, %cst_81 [1] : vector<8x8xf32> to vector<8xf32>
    %133 = vector.shape_cast %132 : vector<8xf32> to vector<8x1xf32>
    %134 = vector.broadcast %133 : vector<8x1xf32> to vector<8x8xf32>
    %135 = arith.subf %131, %134 : vector<8x8xf32>
    %136 = math.exp %135 : vector<8x8xf32>
    %cst_82 = arith.constant dense<0.000000e+00> : vector<8xf32>
    %137 = vector.multi_reduction <add>, %136, %cst_82 [1] : vector<8x8xf32> to vector<8xf32>
    %138 = vector.shape_cast %137 : vector<8xf32> to vector<8x1xf32>
    %139 = tpu.reciprocal %138 {approx = true} : vector<8x1xf32> -> vector<8x1xf32>
    %140 = vector.broadcast %139 : vector<8x1xf32> to vector<8x8xf32>
    %141 = arith.mulf %136, %140 : vector<8x8xf32>
    %142 = arith.truncf %141 : vector<8x8xf32> to vector<8x8xbf16>
    %cst_83 = arith.constant dense<0.000000e+00> : vector<8x32xf32>
    %143 = tpu.matmul %142, %129, %cst_83 {dimension_numbers = #tpu.dot_dimension_numbers<[1], [0], [0], [1], [0, 0, 1, 1], [], []>} : vector<8x8xbf16>, vector<8x32xbf16>, vector<8x32xf32> -> vector<8x32xf32>
    %144 = arith.truncf %143 : vector<8x32xf32> to vector<8x32xbf16>
    %c0_84 = arith.constant 0 : index
    %c0_85 = arith.constant 0 : index
    %145 = vector.load %arg10[%c0_84, %c0_85] : memref<32x32xbf16, #tpu.memory_space<vmem>>, vector<32x32xbf16>
    %cst_86 = arith.constant dense<0.000000e+00> : vector<8x32xf32>
    %146 = tpu.matmul %144, %145, %cst_86 {dimension_numbers = #tpu.dot_dimension_numbers<[1], [0], [0], [1], [0, 0, 1, 1], [], []>} : vector<8x32xbf16>, vector<32x32xbf16>, vector<8x32xf32> -> vector<8x32xf32>
    %c0_87 = arith.constant 0 : index
    %c0_88 = arith.constant 0 : index
    %147 = vector.load %arg11[%c0_87, %c0_88] : memref<1x32xf32, #tpu.memory_space<vmem>>, vector<1x32xf32>
    %148 = vector.broadcast %147 : vector<1x32xf32> to vector<8x32xf32>
    %149 = arith.addf %146, %148 : vector<8x32xf32>
    %150 = arith.addf %117, %149 : vector<8x32xf32>
    %c0_89 = arith.constant 0 : index
    %c0_90 = arith.constant 0 : index
    %151 = vector.load %arg12[%c0_89, %c0_90] : memref<1x32xf32, #tpu.memory_space<vmem>>, vector<1x32xf32>
    %c0_91 = arith.constant 0 : index
    %c0_92 = arith.constant 0 : index
    %152 = vector.load %arg13[%c0_91, %c0_92] : memref<1x32xf32, #tpu.memory_space<vmem>>, vector<1x32xf32>
    %cst_93 = arith.constant dense<0.000000e+00> : vector<8xf32>
    %153 = vector.multi_reduction <add>, %150, %cst_93 [1] : vector<8x32xf32> to vector<8xf32>
    %154 = vector.shape_cast %153 : vector<8xf32> to vector<8x1xf32>
    %cst_94 = arith.constant 3.200000e+01 : f32
    %155 = vector.broadcast %cst_94 : f32 to vector<8x1xf32>
    %156 = arith.divf %154, %155 : vector<8x1xf32>
    %157 = vector.broadcast %156 : vector<8x1xf32> to vector<8x32xf32>
    %158 = arith.subf %150, %157 : vector<8x32xf32>
    %159 = arith.mulf %158, %158 : vector<8x32xf32>
    %cst_95 = arith.constant dense<0.000000e+00> : vector<8xf32>
    %160 = vector.multi_reduction <add>, %159, %cst_95 [1] : vector<8x32xf32> to vector<8xf32>
    %161 = vector.shape_cast %160 : vector<8xf32> to vector<8x1xf32>
    %cst_96 = arith.constant 3.200000e+01 : f32
    %162 = vector.broadcast %cst_96 : f32 to vector<8x1xf32>
    %163 = arith.divf %161, %162 : vector<8x1xf32>
    %164 = vector.broadcast %156 : vector<8x1xf32> to vector<8x32xf32>
    %165 = arith.subf %150, %164 : vector<8x32xf32>
    %cst_97 = arith.constant 9.99999996E-13 : f32
    %166 = vector.broadcast %cst_97 : f32 to vector<8x1xf32>
    %167 = arith.addf %163, %166 : vector<8x1xf32>
    %168 = math.rsqrt %167 : vector<8x1xf32>
    %169 = vector.broadcast %168 : vector<8x1xf32> to vector<8x32xf32>
    %170 = arith.mulf %165, %169 : vector<8x32xf32>
    %171 = vector.broadcast %151 : vector<1x32xf32> to vector<8x32xf32>
    %172 = arith.mulf %170, %171 : vector<8x32xf32>
    %173 = vector.broadcast %152 : vector<1x32xf32> to vector<8x32xf32>
    %174 = arith.addf %172, %173 : vector<8x32xf32>
    %175 = arith.truncf %174 : vector<8x32xf32> to vector<8x32xbf16>
    %c0_98 = arith.constant 0 : index
    %c0_99 = arith.constant 0 : index
    %176 = vector.load %arg14[%c0_98, %c0_99] : memref<32x128xbf16, #tpu.memory_space<vmem>>, vector<32x128xbf16>
    %cst_100 = arith.constant dense<0.000000e+00> : vector<8x128xf32>
    %177 = tpu.matmul %175, %176, %cst_100 {dimension_numbers = #tpu.dot_dimension_numbers<[1], [0], [0], [1], [0, 0, 1, 1], [], []>} : vector<8x32xbf16>, vector<32x128xbf16>, vector<8x128xf32> -> vector<8x128xf32>
    %c0_101 = arith.constant 0 : index
    %c0_102 = arith.constant 0 : index
    %178 = vector.load %arg15[%c0_101, %c0_102] : memref<1x128xf32, #tpu.memory_space<vmem>>, vector<1x128xf32>
    %179 = vector.broadcast %178 : vector<1x128xf32> to vector<8x128xf32>
    %180 = arith.addf %177, %179 : vector<8x128xf32>
    %181 = arith.mulf %180, %180 : vector<8x128xf32>
    %182 = arith.mulf %180, %181 : vector<8x128xf32>
    %cst_103 = arith.constant 4.471500e-02 : f32
    %183 = vector.broadcast %cst_103 : f32 to vector<8x128xf32>
    %184 = arith.mulf %183, %182 : vector<8x128xf32>
    %185 = arith.addf %180, %184 : vector<8x128xf32>
    %cst_104 = arith.constant 0.797884583 : f32
    %186 = vector.broadcast %cst_104 : f32 to vector<8x128xf32>
    %187 = arith.mulf %186, %185 : vector<8x128xf32>
    %188 = math.tanh %187 : vector<8x128xf32>
    %cst_105 = arith.constant 1.000000e+00 : f32
    %189 = vector.broadcast %cst_105 : f32 to vector<8x128xf32>
    %190 = arith.addf %189, %188 : vector<8x128xf32>
    %cst_106 = arith.constant 5.000000e-01 : f32
    %191 = vector.broadcast %cst_106 : f32 to vector<8x128xf32>
    %192 = arith.mulf %191, %190 : vector<8x128xf32>
    %193 = arith.mulf %180, %192 : vector<8x128xf32>
    %194 = arith.truncf %193 : vector<8x128xf32> to vector<8x128xbf16>
    %c0_107 = arith.constant 0 : index
    %c0_108 = arith.constant 0 : index
    %195 = vector.load %arg16[%c0_107, %c0_108] : memref<128x32xbf16, #tpu.memory_space<vmem>>, vector<128x32xbf16>
    %cst_109 = arith.constant dense<0.000000e+00> : vector<8x32xf32>
    %196 = tpu.matmul %194, %195, %cst_109 {dimension_numbers = #tpu.dot_dimension_numbers<[1], [0], [0], [1], [0, 0, 1, 1], [], []>} : vector<8x128xbf16>, vector<128x32xbf16>, vector<8x32xf32> -> vector<8x32xf32>
    %c0_110 = arith.constant 0 : index
    %c0_111 = arith.constant 0 : index
    %197 = vector.load %arg17[%c0_110, %c0_111] : memref<1x32xf32, #tpu.memory_space<vmem>>, vector<1x32xf32>
    %198 = vector.broadcast %197 : vector<1x32xf32> to vector<8x32xf32>
    %199 = arith.addf %196, %198 : vector<8x32xf32>
    %200 = arith.addf %174, %199 : vector<8x32xf32>
    %c0_112 = arith.constant 0 : index
    %c0_113 = arith.constant 0 : index
    %201 = vector.load %arg18[%c0_112, %c0_113] : memref<1x32xf32, #tpu.memory_space<vmem>>, vector<1x32xf32>
    %c0_114 = arith.constant 0 : index
    %c0_115 = arith.constant 0 : index
    %202 = vector.load %arg19[%c0_114, %c0_115] : memref<1x32xf32, #tpu.memory_space<vmem>>, vector<1x32xf32>
    %cst_116 = arith.constant dense<0.000000e+00> : vector<8xf32>
    %203 = vector.multi_reduction <add>, %200, %cst_116 [1] : vector<8x32xf32> to vector<8xf32>
    %204 = vector.shape_cast %203 : vector<8xf32> to vector<8x1xf32>
    %cst_117 = arith.constant 3.200000e+01 : f32
    %205 = vector.broadcast %cst_117 : f32 to vector<8x1xf32>
    %206 = arith.divf %204, %205 : vector<8x1xf32>
    %207 = vector.broadcast %206 : vector<8x1xf32> to vector<8x32xf32>
    %208 = arith.subf %200, %207 : vector<8x32xf32>
    %209 = arith.mulf %208, %208 : vector<8x32xf32>
    %cst_118 = arith.constant dense<0.000000e+00> : vector<8xf32>
    %210 = vector.multi_reduction <add>, %209, %cst_118 [1] : vector<8x32xf32> to vector<8xf32>
    %211 = vector.shape_cast %210 : vector<8xf32> to vector<8x1xf32>
    %cst_119 = arith.constant 3.200000e+01 : f32
    %212 = vector.broadcast %cst_119 : f32 to vector<8x1xf32>
    %213 = arith.divf %211, %212 : vector<8x1xf32>
    %214 = vector.broadcast %206 : vector<8x1xf32> to vector<8x32xf32>
    %215 = arith.subf %200, %214 : vector<8x32xf32>
    %cst_120 = arith.constant 9.99999996E-13 : f32
    %216 = vector.broadcast %cst_120 : f32 to vector<8x1xf32>
    %217 = arith.addf %213, %216 : vector<8x1xf32>
    %218 = math.rsqrt %217 : vector<8x1xf32>
    %219 = vector.broadcast %218 : vector<8x1xf32> to vector<8x32xf32>
    %220 = arith.mulf %215, %219 : vector<8x32xf32>
    %221 = vector.broadcast %201 : vector<1x32xf32> to vector<8x32xf32>
    %222 = arith.mulf %220, %221 : vector<8x32xf32>
    %223 = vector.broadcast %202 : vector<1x32xf32> to vector<8x32xf32>
    %224 = arith.addf %222, %223 : vector<8x32xf32>
    %225 = vector.extract_strided_slice %224 {offsets = [0, 0], sizes = [1, 32], strides = [1, 1]} : vector<8x32xf32> to vector<1x32xf32>
    %226 = arith.truncf %225 : vector<1x32xf32> to vector<1x32xbf16>
    %c0_121 = arith.constant 0 : index
    %c0_122 = arith.constant 0 : index
    %227 = vector.load %arg20[%c0_121, %c0_122] : memref<32x32xbf16, #tpu.memory_space<vmem>>, vector<32x32xbf16>
    %cst_123 = arith.constant dense<0.000000e+00> : vector<1x32xf32>
    %228 = tpu.matmul %226, %227, %cst_123 {dimension_numbers = #tpu.dot_dimension_numbers<[1], [0], [0], [1], [0, 0, 1, 1], [], []>} : vector<1x32xbf16>, vector<32x32xbf16>, vector<1x32xf32> -> vector<1x32xf32>
    %c0_124 = arith.constant 0 : index
    %c0_125 = arith.constant 0 : index
    %229 = vector.load %arg21[%c0_124, %c0_125] : memref<1x32xf32, #tpu.memory_space<vmem>>, vector<1x32xf32>
    %230 = arith.addf %228, %229 : vector<1x32xf32>
    %231 = math.tanh %230 : vector<1x32xf32>
    %232 = vector.shape_cast %231 : vector<1x32xf32> to vector<1x1x32xf32>
    %c0_126 = arith.constant 0 : index
    %c0_127 = arith.constant 0 : index
    %c0_128 = arith.constant 0 : index
    %233 = vector.load %arg22[%c0_126, %c0_127, %c0_128] : memref<1x1x32xf32, #tpu.memory_space<vmem>>, vector<1x1x32xf32>
    tpu.vector_store %arg22[%c0_126, %c0_127, %c0_128], %232 {strides = array<i32>} : memref<1x1x32xf32, #tpu.memory_space<vmem>>, vector<1x1x32xf32>,
    return
  }
  func.func @transform_0(%arg0: i32, %arg1: memref<8x8xi32, #tpu.memory_space<smem>>) -> (i32, i32, i32) {
    %c0_i32 = arith.constant 0 : i32
    %c0_i32_0 = arith.constant 0 : i32
    %c0_i32_1 = arith.constant 0 : i32
    return %arg0, %c0_i32, %c0_i32_0 : i32, i32, i32
  }
  func.func @transform_2(%arg0: i32, %arg1: memref<8x8xi32, #tpu.memory_space<smem>>) -> (i32, i32) {
    %c0_i32 = arith.constant 0 : i32
    %c0_i32_0 = arith.constant 0 : i32
    %c0_i32_1 = arith.constant 0 : i32
    return %c0_i32, %c0_i32_0 : i32, i32
  }
  func.func @transform_3(%arg0: i32, %arg1: memref<8x8xi32, #tpu.memory_space<smem>>) -> (i32, i32) {
    %c0_i32 = arith.constant 0 : i32
    %c0_i32_0 = arith.constant 0 : i32
    %c0_i32_1 = arith.constant 0 : i32
    return %c0_i32, %c0_i32_0 : i32, i32
  }
  func.func @transform_4(%arg0: i32, %arg1: memref<8x8xi32, #tpu.memory_space<smem>>) -> (i32, i32) {
    %c0_i32 = arith.constant 0 : i32
    %c0_i32_0 = arith.constant 0 : i32
    %c0_i32_1 = arith.constant 0 : i32
    return %c0_i32, %c0_i32_0 : i32, i32
  }
  func.func @transform_5(%arg0: i32, %arg1: memref<8x8xi32, #tpu.memory_space<smem>>) -> (i32, i32) {
    %c0_i32 = arith.constant 0 : i32
    %c0_i32_0 = arith.constant 0 : i32
    %c0_i32_1 = arith.constant 0 : i32
    return %c0_i32, %c0_i32_0 : i32, i32
  }
  func.func @transform_6(%arg0: i32, %arg1: memref<8x8xi32, #tpu.memory_space<smem>>) -> (i32, i32) {
    %c0_i32 = arith.constant 0 : i32
    %c0_i32_0 = arith.constant 0 : i32
    %c0_i32_1 = arith.constant 0 : i32
    return %c0_i32, %c0_i32_0 : i32, i32
  }
  func.func @transform_7(%arg0: i32, %arg1: memref<8x8xi32, #tpu.memory_space<smem>>) -> (i32, i32) {
    %c0_i32 = arith.constant 0 : i32
    %c0_i32_0 = arith.constant 0 : i32
    %c0_i32_1 = arith.constant 0 : i32
    return %c0_i32, %c0_i32_0 : i32, i32
  }
  func.func @transform_8(%arg0: i32, %arg1: memref<8x8xi32, #tpu.memory_space<smem>>) -> (i32, i32) {
    %c0_i32 = arith.constant 0 : i32
    %c0_i32_0 = arith.constant 0 : i32
    %c0_i32_1 = arith.constant 0 : i32
    return %c0_i32, %c0_i32_0 : i32, i32
  }
  func.func @transform_9(%arg0: i32, %arg1: memref<8x8xi32, #tpu.memory_space<smem>>) -> (i32, i32) {
    %c0_i32 = arith.constant 0 : i32
    %c0_i32_0 = arith.constant 0 : i32
    %c0_i32_1 = arith.constant 0 : i32
    return %c0_i32, %c0_i32_0 : i32, i32
  }
  func.func @transform_10(%arg0: i32, %arg1: memref<8x8xi32, #tpu.memory_space<smem>>) -> (i32, i32) {
    %c0_i32 = arith.constant 0 : i32
    %c0_i32_0 = arith.constant 0 : i32
    %c0_i32_1 = arith.constant 0 : i32
    return %c0_i32, %c0_i32_0 : i32, i32
  }
  func.func @transform_11(%arg0: i32, %arg1: memref<8x8xi32, #tpu.memory_space<smem>>) -> (i32, i32) {
    %c0_i32 = arith.constant 0 : i32
    %c0_i32_0 = arith.constant 0 : i32
    %c0_i32_1 = arith.constant 0 : i32
    return %c0_i32, %c0_i32_0 : i32, i32
  }
  func.func @transform_12(%arg0: i32, %arg1: memref<8x8xi32, #tpu.memory_space<smem>>) -> (i32, i32) {
    %c0_i32 = arith.constant 0 : i32
    %c0_i32_0 = arith.constant 0 : i32
    %c0_i32_1 = arith.constant 0 : i32
    return %c0_i32, %c0_i32_0 : i32, i32
  }
  func.func @transform_13(%arg0: i32, %arg1: memref<8x8xi32, #tpu.memory_space<smem>>) -> (i32, i32) {
    %c0_i32 = arith.constant 0 : i32
    %c0_i32_0 = arith.constant 0 : i32
    %c0_i32_1 = arith.constant 0 : i32
    return %c0_i32, %c0_i32_0 : i32, i32
  }
  func.func @transform_14(%arg0: i32, %arg1: memref<8x8xi32, #tpu.memory_space<smem>>) -> (i32, i32) {
    %c0_i32 = arith.constant 0 : i32
    %c0_i32_0 = arith.constant 0 : i32
    %c0_i32_1 = arith.constant 0 : i32
    return %c0_i32, %c0_i32_0 : i32, i32
  }
  func.func @transform_15(%arg0: i32, %arg1: memref<8x8xi32, #tpu.memory_space<smem>>) -> (i32, i32) {
    %c0_i32 = arith.constant 0 : i32
    %c0_i32_0 = arith.constant 0 : i32
    %c0_i32_1 = arith.constant 0 : i32
    return %c0_i32, %c0_i32_0 : i32, i32
  }
  func.func @transform_16(%arg0: i32, %arg1: memref<8x8xi32, #tpu.memory_space<smem>>) -> (i32, i32) {
    %c0_i32 = arith.constant 0 : i32
    %c0_i32_0 = arith.constant 0 : i32
    %c0_i32_1 = arith.constant 0 : i32
    return %c0_i32, %c0_i32_0 : i32, i32
  }
  func.func @transform_17(%arg0: i32, %arg1: memref<8x8xi32, #tpu.memory_space<smem>>) -> (i32, i32) {
    %c0_i32 = arith.constant 0 : i32
    %c0_i32_0 = arith.constant 0 : i32
    %c0_i32_1 = arith.constant 0 : i32
    return %c0_i32, %c0_i32_0 : i32, i32
  }
  func.func @transform_18(%arg0: i32, %arg1: memref<8x8xi32, #tpu.memory_space<smem>>) -> (i32, i32) {
    %c0_i32 = arith.constant 0 : i32
    %c0_i32_0 = arith.constant 0 : i32
    %c0_i32_1 = arith.constant 0 : i32
    return %c0_i32, %c0_i32_0 : i32, i32
  }
  func.func @transform_19(%arg0: i32, %arg1: memref<8x8xi32, #tpu.memory_space<smem>>) -> (i32, i32) {
    %c0_i32 = arith.constant 0 : i32
    %c0_i32_0 = arith.constant 0 : i32
    %c0_i32_1 = arith.constant 0 : i32
    return %c0_i32, %c0_i32_0 : i32, i32
  }
  func.func @transform_20(%arg0: i32, %arg1: memref<8x8xi32, #tpu.memory_space<smem>>) -> (i32, i32, i32) {
    %c0_i32 = arith.constant 0 : i32
    %c0_i32_0 = arith.constant 0 : i32
    %c0_i32_1 = arith.constant 0 : i32
    return %arg0, %c0_i32, %c0_i32_0 : i32, i32, i32
  }
}

</mosaic_0001>

<llo_original>
// kernel: tpu_custom_call.1
$region0: #{tpu_custom_call.1}
  #allocation0 [shape = 'u32[]', space=smem, size = 0x4, offset = 0x4, fixed_abs, tag = 'smem constant byte address 0x4 - core index']
  #allocation1 [shape = 'u32[144,128]{1,0:T(1,128)}', space=vmem, size = 0x12000, scoped, tag = 'internal scratch']
  #allocation2 [shape = 'f32[8,32]{1,0:T(8,128)}', space=vmem, size = 0x1000, scoped, tag = 'scratch operand']
  #allocation3 [shape = 's32[8]{0}', space=sflag, size = 0x20, scoped, tag = 'scratch operand']
  #allocation4 [shape = 's32[1]{0}', space=sflag, size = 0x4, scoped, tag = 'scoped memory for tpu_custom_call.1']
  #allocation5 [shape = 'u8[4096]{0}', space=smem, size = 0x1000, scoped, tag = 'prefetched SMEM operand 0']
  #allocation8 [shape = 's32[]', space=sflag, size = 0x4, offset = 0, fixed_abs, tag = 'sflag constant byte address 0x0 - dummy sync flag']
  #allocation9 [shape = 's32[]', space=sflag, size = 0x4, offset = 0, fixed_abs, tag = 'sflag constant byte address 0x0 - dummy sync flag']
  #allocation10 [shape = 's32[]', space=sflag, size = 0x4, offset = 0, fixed_abs, tag = 'sflag constant byte address 0x0 - dummy sync flag']
  #allocation11 [shape = 's32[]', space=sflag, size = 0x4, offset = 0, fixed_abs, tag = 'sflag constant byte address 0x0 - dummy sync flag']
  #allocation12 [shape = 's32[]', space=sflag, size = 0x4, offset = 0, fixed_abs, tag = 'sflag constant byte address 0x0 - dummy sync flag']
  #allocation13 [shape = 's32[]', space=sflag, size = 0x4, offset = 0, fixed_abs, tag = 'sflag constant byte address 0x0 - dummy sync flag']
  #allocation14 [shape = 's32[]', space=sflag, size = 0x4, offset = 0, fixed_abs, tag = 'sflag constant byte address 0x0 - dummy sync flag']
  #allocation15 [shape = 's32[]', space=sflag, size = 0x4, offset = 0, fixed_abs, tag = 'sflag constant byte address 0x0 - dummy sync flag']
  %s0 = inlined_call_operand.vmem [shape: s32[8,8], index: 0, kind: input, shape index: {}]
  %s1 = inlined_call_operand.vmem [shape: f32[8,8,1], index: 1, kind: input, shape index: {}]
  %s2 = inlined_call_operand.vmem [shape: f32[64,32], index: 2, kind: input, shape index: {}]
  %s3 = inlined_call_operand.vmem [shape: f32[2,32], index: 3, kind: input, shape index: {}]
  %s4 = inlined_call_operand.vmem [shape: f32[8,32], index: 4, kind: input, shape index: {}]
  %s5 = inlined_call_operand.vmem [shape: f32[1,32], index: 5, kind: input, shape index: {}]
  %s6 = inlined_call_operand.vmem [shape: f32[1,32], index: 6, kind: input, shape index: {}]
  %s7 = inlined_call_operand.vmem [shape: bf16[32,96], index: 7, kind: input, shape index: {}]
  %s8 = inlined_call_operand.vmem [shape: f32[1,96], index: 8, kind: input, shape index: {}]
  %s9 = inlined_call_operand.vmem [shape: bf16[32,32], index: 9, kind: input, shape index: {}]
  %s10 = inlined_call_operand.vmem [shape: f32[1,32], index: 10, kind: input, shape index: {}]
  %s11 = inlined_call_operand.vmem [shape: f32[1,32], index: 11, kind: input, shape index: {}]
  %s12 = inlined_call_operand.vmem [shape: f32[1,32], index: 12, kind: input, shape index: {}]
  %s13 = inlined_call_operand.vmem [shape: bf16[32,128], index: 13, kind: input, shape index: {}]
  %s14 = inlined_call_operand.vmem [shape: f32[1,128], index: 14, kind: input, shape index: {}]
  %s15 = inlined_call_operand.vmem [shape: bf16[128,32], index: 15, kind: input, shape index: {}]
  %s16 = inlined_call_operand.vmem [shape: f32[1,32], index: 16, kind: input, shape index: {}]
  %s17 = inlined_call_operand.vmem [shape: f32[1,32], index: 17, kind: input, shape index: {}]
  %s18 = inlined_call_operand.vmem [shape: f32[1,32], index: 18, kind: input, shape index: {}]
  %s19 = inlined_call_operand.vmem [shape: bf16[32,32], index: 19, kind: input, shape index: {}]
  %s20 = inlined_call_operand.vmem [shape: f32[1,32], index: 20, kind: input, shape index: {}]
  %s21 = inlined_call_operand.hbm [shape: f32[8,1,32], index: 21, kind: output, shape index: {}]
  %s22 = sld [smem:[#allocation0]]
  $region349: #{tpu_custom_call.1} parent=0
    _
  %s24 = ssub.s32 1, %s22
  %s25 = scalar_select 0, %s24, %s22
  %s26 = sshll.u32 %s0, 4
  %s27 = int_to_ptr.vmem [resolvable:$true] %s26
  %29 = dma.vmem_to_smem %s27, 128, [#allocation5], [#allocation4]
  %30 = dma.done [#allocation4], 128
  %31 = sfence
  $region1: #{tpu_custom_call.1} parent=0
    #allocation6 [shape = 'u8[1024]{0}', space=vmem, size = 0x400, scoped, tag = 'output window, operand 0']
    #allocation7 [shape = 's32[2]{0}', space=sflag, size = 0x8, scoped, tag = 'scoped memory for tpu_custom_call.1']
    %32 = vsyncpa [#allocation7], 0
    %s33 = scalar_lea.sflag [#allocation7], 1
    %34 = vsyncpa %s33, 0
    loop: start=0, step=1, limit=10
    $region2: #{tpu_custom_call.1} parent=1 // loop_pre_header
      _
    $region3: #{tpu_custom_call.1} parent=1 // loop_header
      %s36 = sphi 0, %s40
      %p37 = scmp.ge.s32.totalorder %s36, 10
      %s46 = sphi 0, %s48
      %s49 = sphi 0, %s46
      %s50 = sphi 0, %s49
      %s66 = sphi 0, %s50
      %s70 = sphi 0, %s70
      %s72 = sphi 0, %s70
      %s73 = sphi 0, %s72
      %s87 = sphi 0, %s73
      %s91 = sphi 0, %s91
      %s93 = sphi 0, %s91
      %s94 = sphi 0, %s93
      %s108 = sphi 0, %s94
      %s112 = sphi 0, %s112
      %s114 = sphi 0, %s112
      %s115 = sphi 0, %s114
      %s129 = sphi 0, %s115
      %s133 = sphi 0, %s133
      %s135 = sphi 0, %s133
      %s136 = sphi 0, %s135
      %s150 = sphi 0, %s136
      %s154 = sphi 0, %s154
      %s156 = sphi 0, %s154
      %s157 = sphi 0, %s156
      %s171 = sphi 0, %s157
      %s175 = sphi 0, %s175
      %s177 = sphi 0, %s175
      %s178 = sphi 0, %s177
      %s192 = sphi 0, %s178
      %s196 = sphi 0, %s196
      %s198 = sphi 0, %s196
      %s199 = sphi 0, %s198
      %s213 = sphi 0, %s199
      %s217 = sphi 0, %s217
      %s219 = sphi 0, %s217
      %s220 = sphi 0, %s219
      %s234 = sphi 0, %s220
      %s238 = sphi 0, %s238
      %s240 = sphi 0, %s238
      %s241 = sphi 0, %s240
      %s255 = sphi 0, %s241
      %s259 = sphi 0, %s259
      %s261 = sphi 0, %s259
      %s262 = sphi 0, %s261
      %s276 = sphi 0, %s262
      %s280 = sphi 0, %s280
      %s282 = sphi 0, %s280
      %s283 = sphi 0, %s282
      %s297 = sphi 0, %s283
      %s301 = sphi 0, %s301
      %s303 = sphi 0, %s301
      %s304 = sphi 0, %s303
      %s318 = sphi 0, %s304
      %s322 = sphi 0, %s322
      %s324 = sphi 0, %s322
      %s325 = sphi 0, %s324
      %s339 = sphi 0, %s325
      %s343 = sphi 0, %s343
      %s345 = sphi 0, %s343
      %s346 = sphi 0, %s345
      %s360 = sphi 0, %s346
      %s364 = sphi 0, %s364
      %s366 = sphi 0, %s364
      %s367 = sphi 0, %s366
      %s381 = sphi 0, %s367
      %s385 = sphi 0, %s385
      %s387 = sphi 0, %s385
      %s388 = sphi 0, %s387
      %s402 = sphi 0, %s388
      %s406 = sphi 0, %s406
      %s408 = sphi 0, %s406
      %s409 = sphi 0, %s408
      %s423 = sphi 0, %s409
      %s427 = sphi 0, %s427
      %s429 = sphi 0, %s427
      %s430 = sphi 0, %s429
      %s444 = sphi 0, %s430
      %s450 = sphi 0, %s452
      %s453 = sphi 0, %s450
      %s454 = sphi 0, %s453
      %s470 = sphi 0, %s454
    $region4: #{tpu_custom_call.1} parent=1 // loop_header_branch
      %39 = sbr.rel (%p37) target = $region8
    $region5: #{tpu_custom_call.1} parent=1 // loop_body
      %s41 = ssub.s32 %s36, 1
      %s42 = ssub.s32 %s36, 2
      %s43 = sadd.s32 %s36, 1
      %s44 = ssub.s32 %s36, %s43
      %p45 = scmp.eq.s32.totalorder %s44, 0
      %s47 = sadd.s32 %s46, 1
      %s48 = scalar_select %p45, %s46, %s47
      %p51 = pneg %p45
      %p52 = scmp.eq.s32.totalorder %s36, 7
      %p53 = por %p51, %p52
      %p54 = scmp.ne.s32.totalorder %s46, %s49
      %p55 = scmp.eq.s32.totalorder %s36, 0
      %p56 = por %p54, %p55
      %p57 = scmp.ne.s32.totalorder %s46, %s49
      %p58 = scmp.eq.s32.totalorder %s41, 7
      %p59 = por %p57, %p58
      %p60 = scmp.ne.s32.totalorder %s49, %s50
      %p61 = scmp.eq.s32.totalorder %s41, 0
      %p62 = por %p60, %p61
      %p63 = scmp.ne.s32.totalorder %s49, %s50
      %p64 = scmp.eq.s32.totalorder %s42, 7
      %p65 = por %p63, %p64
      %p67 = scmp.ne.s32.totalorder %s50, %s66
      %p68 = scmp.eq.s32.totalorder %s42, 0
      %p69 = por %p67, %p68
      %s71 = sadd.s32 %s70, 1
      %p74 = scmp.eq.s32.totalorder %s36, 7
      %p75 = scmp.ne.s32.totalorder %s70, %s72
      %p76 = scmp.eq.s32.totalorder %s36, 0
      %p77 = por %p75, %p76
      %p78 = scmp.ne.s32.totalorder %s70, %s72
      %p79 = scmp.eq.s32.totalorder %s41, 7
      %p80 = por %p78, %p79
      %p81 = scmp.ne.s32.totalorder %s72, %s73
      %p82 = scmp.eq.s32.totalorder %s41, 0
      %p83 = por %p81, %p82
      %p84 = scmp.ne.s32.totalorder %s72, %s73
      %p85 = scmp.eq.s32.totalorder %s42, 7
      %p86 = por %p84, %p85
      %p88 = scmp.ne.s32.totalorder %s73, %s87
      %p89 = scmp.eq.s32.totalorder %s42, 0
      %p90 = por %p88, %p89
      %s92 = sadd.s32 %s91, 1
      %p95 = scmp.eq.s32.totalorder %s36, 7
      %p96 = scmp.ne.s32.totalorder %s91, %s93
      %p97 = scmp.eq.s32.totalorder %s36, 0
      %p98 = por %p96, %p97
      %p99 = scmp.ne.s32.totalorder %s91, %s93
      %p100 = scmp.eq.s32.totalorder %s41, 7
      %p101 = por %p99, %p100
      %p102 = scmp.ne.s32.totalorder %s93, %s94
      %p103 = scmp.eq.s32.totalorder %s41, 0
      %p104 = por %p102, %p103
      %p105 = scmp.ne.s32.totalorder %s93, %s94
      %p106 = scmp.eq.s32.totalorder %s42, 7
      %p107 = por %p105, %p106
      %p109 = scmp.ne.s32.totalorder %s94, %s108
      %p110 = scmp.eq.s32.totalorder %s42, 0
      %p111 = por %p109, %p110
      %s113 = sadd.s32 %s112, 1
      %p116 = scmp.eq.s32.totalorder %s36, 7
      %p117 = scmp.ne.s32.totalorder %s112, %s114
      %p118 = scmp.eq.s32.totalorder %s36, 0
      %p119 = por %p117, %p118
      %p120 = scmp.ne.s32.totalorder %s112, %s114
      %p121 = scmp.eq.s32.totalorder %s41, 7
      %p122 = por %p120, %p121
      %p123 = scmp.ne.s32.totalorder %s114, %s115
      %p124 = scmp.eq.s32.totalorder %s41, 0
      %p125 = por %p123, %p124
      %p126 = scmp.ne.s32.totalorder %s114, %s115
      %p127 = scmp.eq.s32.totalorder %s42, 7
      %p128 = por %p126, %p127
      %p130 = scmp.ne.s32.totalorder %s115, %s129
      %p131 = scmp.eq.s32.totalorder %s42, 0
      %p132 = por %p130, %p131
      %s134 = sadd.s32 %s133, 1
      %p137 = scmp.eq.s32.totalorder %s36, 7
      %p138 = scmp.ne.s32.totalorder %s133, %s135
      %p139 = scmp.eq.s32.totalorder %s36, 0
      %p140 = por %p138, %p139
      %p141 = scmp.ne.s32.totalorder %s133, %s135
      %p142 = scmp.eq.s32.totalorder %s41, 7
      %p143 = por %p141, %p142
      %p144 = scmp.ne.s32.totalorder %s135, %s136
      %p145 = scmp.eq.s32.totalorder %s41, 0
      %p146 = por %p144, %p145
      %p147 = scmp.ne.s32.totalorder %s135, %s136
      %p148 = scmp.eq.s32.totalorder %s42, 7
      %p149 = por %p147, %p148
      %p151 = scmp.ne.s32.totalorder %s136, %s150
      %p152 = scmp.eq.s32.totalorder %s42, 0
      %p153 = por %p151, %p152
      %s155 = sadd.s32 %s154, 1
      %p158 = scmp.eq.s32.totalorder %s36, 7
      %p159 = scmp.ne.s32.totalorder %s154, %s156
      %p160 = scmp.eq.s32.totalorder %s36, 0
      %p161 = por %p159, %p160
      %p162 = scmp.ne.s32.totalorder %s154, %s156
      %p163 = scmp.eq.s32.totalorder %s41, 7
      %p164 = por %p162, %p163
      %p165 = scmp.ne.s32.totalorder %s156, %s157
      %p166 = scmp.eq.s32.totalorder %s41, 0
      %p167 = por %p165, %p166
      %p168 = scmp.ne.s32.totalorder %s156, %s157
      %p169 = scmp.eq.s32.totalorder %s42, 7
      %p170 = por %p168, %p169
      %p172 = scmp.ne.s32.totalorder %s157, %s171
      %p173 = scmp.eq.s32.totalorder %s42, 0
      %p174 = por %p172, %p173
      %s176 = sadd.s32 %s175, 1
      %p179 = scmp.eq.s32.totalorder %s36, 7
      %p180 = scmp.ne.s32.totalorder %s175, %s177
      %p181 = scmp.eq.s32.totalorder %s36, 0
      %p182 = por %p180, %p181
      %p183 = scmp.ne.s32.totalorder %s175, %s177
      %p184 = scmp.eq.s32.totalorder %s41, 7
      %p185 = por %p183, %p184
      %p186 = scmp.ne.s32.totalorder %s177, %s178
      %p187 = scmp.eq.s32.totalorder %s41, 0
      %p188 = por %p186, %p187
      %p189 = scmp.ne.s32.totalorder %s177, %s178
      %p190 = scmp.eq.s32.totalorder %s42, 7
      %p191 = por %p189, %p190
      %p193 = scmp.ne.s32.totalorder %s178, %s192
      %p194 = scmp.eq.s32.totalorder %s42, 0
      %p195 = por %p193, %p194
      %s197 = sadd.s32 %s196, 1
      %p200 = scmp.eq.s32.totalorder %s36, 7
      %p201 = scmp.ne.s32.totalorder %s196, %s198
      %p202 = scmp.eq.s32.totalorder %s36, 0
      %p203 = por %p201, %p202
      %p204 = scmp.ne.s32.totalorder %s196, %s198
      %p205 = scmp.eq.s32.totalorder %s41, 7
      %p206 = por %p204, %p205
      %p207 = scmp.ne.s32.totalorder %s198, %s199
      %p208 = scmp.eq.s32.totalorder %s41, 0
      %p209 = por %p207, %p208
      %p210 = scmp.ne.s32.totalorder %s198, %s199
      %p211 = scmp.eq.s32.totalorder %s42, 7
      %p212 = por %p210, %p211
      %p214 = scmp.ne.s32.totalorder %s199, %s213
      %p215 = scmp.eq.s32.totalorder %s42, 0
      %p216 = por %p214, %p215
      %s218 = sadd.s32 %s217, 1
      %p221 = scmp.eq.s32.totalorder %s36, 7
      %p222 = scmp.ne.s32.totalorder %s217, %s219
      %p223 = scmp.eq.s32.totalorder %s36, 0
      %p224 = por %p222, %p223
      %p225 = scmp.ne.s32.totalorder %s217, %s219
      %p226 = scmp.eq.s32.totalorder %s41, 7
      %p227 = por %p225, %p226
      %p228 = scmp.ne.s32.totalorder %s219, %s220
      %p229 = scmp.eq.s32.totalorder %s41, 0
      %p230 = por %p228, %p229
      %p231 = scmp.ne.s32.totalorder %s219, %s220
      %p232 = scmp.eq.s32.totalorder %s42, 7
      %p233 = por %p231, %p232
      %p235 = scmp.ne.s32.totalorder %s220, %s234
      %p236 = scmp.eq.s32.totalorder %s42, 0
      %p237 = por %p235, %p236
      %s239 = sadd.s32 %s238, 1
      %p242 = scmp.eq.s32.totalorder %s36, 7
      %p243 = scmp.ne.s32.totalorder %s238, %s240
      %p244 = scmp.eq.s32.totalorder %s36, 0
      %p245 = por %p243, %p244
      %p246 = scmp.ne.s32.totalorder %s238, %s240
      %p247 = scmp.eq.s32.totalorder %s41, 7
      %p248 = por %p246, %p247
      %p249 = scmp.ne.s32.totalorder %s240, %s241
      %p250 = scmp.eq.s32.totalorder %s41, 0
      %p251 = por %p249, %p250
      %p252 = scmp.ne.s32.totalorder %s240, %s241
      %p253 = scmp.eq.s32.totalorder %s42, 7
      %p254 = por %p252, %p253
      %p256 = scmp.ne.s32.totalorder %s241, %s255
      %p257 = scmp.eq.s32.totalorder %s42, 0
      %p258 = por %p256, %p257
      %s260 = sadd.s32 %s259, 1
      %p263 = scmp.eq.s32.totalorder %s36, 7
      %p264 = scmp.ne.s32.totalorder %s259, %s261
      %p265 = scmp.eq.s32.totalorder %s36, 0
      %p266 = por %p264, %p265
      %p267 = scmp.ne.s32.totalorder %s259, %s261
      %p268 = scmp.eq.s32.totalorder %s41, 7
      %p269 = por %p267, %p268
      %p270 = scmp.ne.s32.totalorder %s261, %s262
      %p271 = scmp.eq.s32.totalorder %s41, 0
      %p272 = por %p270, %p271
      %p273 = scmp.ne.s32.totalorder %s261, %s262
      %p274 = scmp.eq.s32.totalorder %s42, 7
      %p275 = por %p273, %p274
      %p277 = scmp.ne.s32.totalorder %s262, %s276
      %p278 = scmp.eq.s32.totalorder %s42, 0
      %p279 = por %p277, %p278
      %s281 = sadd.s32 %s280, 1
      %p284 = scmp.eq.s32.totalorder %s36, 7
      %p285 = scmp.ne.s32.totalorder %s280, %s282
      %p286 = scmp.eq.s32.totalorder %s36, 0
      %p287 = por %p285, %p286
      %p288 = scmp.ne.s32.totalorder %s280, %s282
      %p289 = scmp.eq.s32.totalorder %s41, 7
      %p290 = por %p288, %p289
      %p291 = scmp.ne.s32.totalorder %s282, %s283
      %p292 = scmp.eq.s32.totalorder %s41, 0
      %p293 = por %p291, %p292
      %p294 = scmp.ne.s32.totalorder %s282, %s283
      %p295 = scmp.eq.s32.totalorder %s42, 7
      %p296 = por %p294, %p295
      %p298 = scmp.ne.s32.totalorder %s283, %s297
      %p299 = scmp.eq.s32.totalorder %s42, 0
      %p300 = por %p298, %p299
      %s302 = sadd.s32 %s301, 1
      %p305 = scmp.eq.s32.totalorder %s36, 7
      %p306 = scmp.ne.s32.totalorder %s301, %s303
      %p307 = scmp.eq.s32.totalorder %s36, 0
      %p308 = por %p306, %p307
      %p309 = scmp.ne.s32.totalorder %s301, %s303
      %p310 = scmp.eq.s32.totalorder %s41, 7
      %p311 = por %p309, %p310
      %p312 = scmp.ne.s32.totalorder %s303, %s304
      %p313 = scmp.eq.s32.totalorder %s41, 0
      %p314 = por %p312, %p313
      %p315 = scmp.ne.s32.totalorder %s303, %s304
      %p316 = scmp.eq.s32.totalorder %s42, 7
      %p317 = por %p315, %p316
      %p319 = scmp.ne.s32.totalorder %s304, %s318
      %p320 = scmp.eq.s32.totalorder %s42, 0
      %p321 = por %p319, %p320
      %s323 = sadd.s32 %s322, 1
      %p326 = scmp.eq.s32.totalorder %s36, 7
      %p327 = scmp.ne.s32.totalorder %s322, %s324
      %p328 = scmp.eq.s32.totalorder %s36, 0
      %p329 = por %p327, %p328
      %p330 = scmp.ne.s32.totalorder %s322, %s324
      %p331 = scmp.eq.s32.totalorder %s41, 7
      %p332 = por %p330, %p331
      %p333 = scmp.ne.s32.totalorder %s324, %s325
      %p334 = scmp.eq.s32.totalorder %s41, 0
      %p335 = por %p333, %p334
      %p336 = scmp.ne.s32.totalorder %s324, %s325
      %p337 = scmp.eq.s32.totalorder %s42, 7
      %p338 = por %p336, %p337
      %p340 = scmp.ne.s32.totalorder %s325, %s339
      %p341 = scmp.eq.s32.totalorder %s42, 0
      %p342 = por %p340, %p341
      %s344 = sadd.s32 %s343, 1
      %p347 = scmp.eq.s32.totalorder %s36, 7
      %p348 = scmp.ne.s32.totalorder %s343, %s345
      %p349 = scmp.eq.s32.totalorder %s36, 0
      %p350 = por %p348, %p349
      %p351 = scmp.ne.s32.totalorder %s343, %s345
      %p352 = scmp.eq.s32.totalorder %s41, 7
      %p353 = por %p351, %p352
      %p354 = scmp.ne.s32.totalorder %s345, %s346
      %p355 = scmp.eq.s32.totalorder %s41, 0
      %p356 = por %p354, %p355
      %p357 = scmp.ne.s32.totalorder %s345, %s346
      %p358 = scmp.eq.s32.totalorder %s42, 7
      %p359 = por %p357, %p358
      %p361 = scmp.ne.s32.totalorder %s346, %s360
      %p362 = scmp.eq.s32.totalorder %s42, 0
      %p363 = por %p361, %p362
      %s365 = sadd.s32 %s364, 1
      %p368 = scmp.eq.s32.totalorder %s36, 7
      %p369 = scmp.ne.s32.totalorder %s364, %s366
      %p370 = scmp.eq.s32.totalorder %s36, 0
      %p371 = por %p369, %p370
      %p372 = scmp.ne.s32.totalorder %s364, %s366
      %p373 = scmp.eq.s32.totalorder %s41, 7
      %p374 = por %p372, %p373
      %p375 = scmp.ne.s32.totalorder %s366, %s367
      %p376 = scmp.eq.s32.totalorder %s41, 0
      %p377 = por %p375, %p376
      %p378 = scmp.ne.s32.totalorder %s366, %s367
      %p379 = scmp.eq.s32.totalorder %s42, 7
      %p380 = por %p378, %p379
      %p382 = scmp.ne.s32.totalorder %s367, %s381
      %p383 = scmp.eq.s32.totalorder %s42, 0
      %p384 = por %p382, %p383
      %s386 = sadd.s32 %s385, 1
      %p389 = scmp.eq.s32.totalorder %s36, 7
      %p390 = scmp.ne.s32.totalorder %s385, %s387
      %p391 = scmp.eq.s32.totalorder %s36, 0
      %p392 = por %p390, %p391
      %p393 = scmp.ne.s32.totalorder %s385, %s387
      %p394 = scmp.eq.s32.totalorder %s41, 7
      %p395 = por %p393, %p394
      %p396 = scmp.ne.s32.totalorder %s387, %s388
      %p397 = scmp.eq.s32.totalorder %s41, 0
      %p398 = por %p396, %p397
      %p399 = scmp.ne.s32.totalorder %s387, %s388
      %p400 = scmp.eq.s32.totalorder %s42, 7
      %p401 = por %p399, %p400
      %p403 = scmp.ne.s32.totalorder %s388, %s402
      %p404 = scmp.eq.s32.totalorder %s42, 0
      %p405 = por %p403, %p404
      %s407 = sadd.s32 %s406, 1
      %p410 = scmp.eq.s32.totalorder %s36, 7
      %p411 = scmp.ne.s32.totalorder %s406, %s408
      %p412 = scmp.eq.s32.totalorder %s36, 0
      %p413 = por %p411, %p412
      %p414 = scmp.ne.s32.totalorder %s406, %s408
      %p415 = scmp.eq.s32.totalorder %s41, 7
      %p416 = por %p414, %p415
      %p417 = scmp.ne.s32.totalorder %s408, %s409
      %p418 = scmp.eq.s32.totalorder %s41, 0
      %p419 = por %p417, %p418
      %p420 = scmp.ne.s32.totalorder %s408, %s409
      %p421 = scmp.eq.s32.totalorder %s42, 7
      %p422 = por %p420, %p421
      %p424 = scmp.ne.s32.totalorder %s409, %s423
      %p425 = scmp.eq.s32.totalorder %s42, 0
      %p426 = por %p424, %p425
      %s428 = sadd.s32 %s427, 1
      %p431 = scmp.eq.s32.totalorder %s36, 7
      %p432 = scmp.ne.s32.totalorder %s427, %s429
      %p433 = scmp.eq.s32.totalorder %s36, 0
      %p434 = por %p432, %p433
      %p435 = scmp.ne.s32.totalorder %s427, %s429
      %p436 = scmp.eq.s32.totalorder %s41, 7
      %p437 = por %p435, %p436
      %p438 = scmp.ne.s32.totalorder %s429, %s430
      %p439 = scmp.eq.s32.totalorder %s41, 0
      %p440 = por %p438, %p439
      %p441 = scmp.ne.s32.totalorder %s429, %s430
      %p442 = scmp.eq.s32.totalorder %s42, 7
      %p443 = por %p441, %p442
      %p445 = scmp.ne.s32.totalorder %s430, %s444
      %p446 = scmp.eq.s32.totalorder %s42, 0
      %p447 = por %p445, %p446
      %s448 = ssub.s32 %s36, %s43
      %p449 = scmp.eq.s32.totalorder %s448, 0
      %s451 = sadd.s32 %s450, 1
      %s452 = scalar_select %p449, %s450, %s451
      %p455 = pneg %p449
      %p456 = scmp.eq.s32.totalorder %s36, 7
      %p457 = por %p455, %p456
      %p458 = scmp.ne.s32.totalorder %s450, %s453
      %p459 = scmp.eq.s32.totalorder %s36, 0
      %p460 = por %p458, %p459
      %p461 = scmp.ne.s32.totalorder %s450, %s453
      %p462 = scmp.eq.s32.totalorder %s41, 7
      %p463 = por %p461, %p462
      %p464 = scmp.ne.s32.totalorder %s453, %s454
      %p465 = scmp.eq.s32.totalorder %s41, 0
      %p466 = por %p464, %p465
      %p467 = scmp.ne.s32.totalorder %s453, %s454
      %p468 = scmp.eq.s32.totalorder %s42, 7
      %p469 = por %p467, %p468
      %p471 = scmp.ne.s32.totalorder %s454, %s470
      %p472 = scmp.eq.s32.totalorder %s42, 0
      %p473 = por %p471, %p472
      %p474 = scmp.le.s32.totalorder 1, %s36
      %p475 = scmp.lt.s32.totalorder %s36, 9
      %p476 = pnand %p474, %p475
      %p477 = pneg %p476
      // Predicated region
      $region9: #{tpu_custom_call.1} parent=5 // pred_check
        _
      $region10: #{tpu_custom_call.1} parent=5 // pred_check_branch
        %479 = sbr.rel (%p476) target = $region12
      $region11: #{tpu_custom_call.1} parent=5 // pred_region
        %s480 = ssub.s32 %s36, 1
        // Predicated region
        $region13: #{tpu_custom_call.1} parent=11 // pred_check
          %p481 = pneg %p83
        $region14: #{tpu_custom_call.1} parent=11 // pred_check_branch
          %483 = sbr.rel (%p481) target = $region16
        $region15: #{tpu_custom_call.1} parent=11 // pred_region
          _
        $region16: #{tpu_custom_call.1} parent=11 // pred_fallthru
          _
        // Predicated region
        $region17: #{tpu_custom_call.1} parent=11 // pred_check
          %p484 = pneg %p104
        $region18: #{tpu_custom_call.1} parent=11 // pred_check_branch
          %486 = sbr.rel (%p484) target = $region20
        $region19: #{tpu_custom_call.1} parent=11 // pred_region
          _
        $region20: #{tpu_custom_call.1} parent=11 // pred_fallthru
          _
        // Predicated region
        $region21: #{tpu_custom_call.1} parent=11 // pred_check
          %p487 = pneg %p125
        $region22: #{tpu_custom_call.1} parent=11 // pred_check_branch
          %489 = sbr.rel (%p487) target = $region24
        $region23: #{tpu_custom_call.1} parent=11 // pred_region
          _
        $region24: #{tpu_custom_call.1} parent=11 // pred_fallthru
          _
        // Predicated region
        $region25: #{tpu_custom_call.1} parent=11 // pred_check
          %p490 = pneg %p146
        $region26: #{tpu_custom_call.1} parent=11 // pred_check_branch
          %492 = sbr.rel (%p490) target = $region28
        $region27: #{tpu_custom_call.1} parent=11 // pred_region
          _
        $region28: #{tpu_custom_call.1} parent=11 // pred_fallthru
          _
        // Predicated region
        $region29: #{tpu_custom_call.1} parent=11 // pred_check
          %p493 = pneg %p167
        $region30: #{tpu_custom_call.1} parent=11 // pred_check_branch
          %495 = sbr.rel (%p493) target = $region32
        $region31: #{tpu_custom_call.1} parent=11 // pred_region
          _
        $region32: #{tpu_custom_call.1} parent=11 // pred_fallthru
          _
        // Predicated region
        $region33: #{tpu_custom_call.1} parent=11 // pred_check
          %p496 = pneg %p188
        $region34: #{tpu_custom_call.1} parent=11 // pred_check_branch
          %498 = sbr.rel (%p496) target = $region36
        $region35: #{tpu_custom_call.1} parent=11 // pred_region
          _
        $region36: #{tpu_custom_call.1} parent=11 // pred_fallthru
          _
        // Predicated region
        $region37: #{tpu_custom_call.1} parent=11 // pred_check
          %p499 = pneg %p209
        $region38: #{tpu_custom_call.1} parent=11 // pred_check_branch
          %501 = sbr.rel (%p499) target = $region40
        $region39: #{tpu_custom_call.1} parent=11 // pred_region
          _
        $region40: #{tpu_custom_call.1} parent=11 // pred_fallthru
          _
        // Predicated region
        $region41: #{tpu_custom_call.1} parent=11 // pred_check
          %p502 = pneg %p230
        $region42: #{tpu_custom_call.1} parent=11 // pred_check_branch
          %504 = sbr.rel (%p502) target = $region44
        $region43: #{tpu_custom_call.1} parent=11 // pred_region
          _
        $region44: #{tpu_custom_call.1} parent=11 // pred_fallthru
          _
        // Predicated region
        $region45: #{tpu_custom_call.1} parent=11 // pred_check
          %p505 = pneg %p251
        $region46: #{tpu_custom_call.1} parent=11 // pred_check_branch
          %507 = sbr.rel (%p505) target = $region48
        $region47: #{tpu_custom_call.1} parent=11 // pred_region
          _
        $region48: #{tpu_custom_call.1} parent=11 // pred_fallthru
          _
        // Predicated region
        $region49: #{tpu_custom_call.1} parent=11 // pred_check
          %p508 = pneg %p272
        $region50: #{tpu_custom_call.1} parent=11 // pred_check_branch
          %510 = sbr.rel (%p508) target = $region52
        $region51: #{tpu_custom_call.1} parent=11 // pred_region
          _
        $region52: #{tpu_custom_call.1} parent=11 // pred_fallthru
          _
        // Predicated region
        $region53: #{tpu_custom_call.1} parent=11 // pred_check
          %p511 = pneg %p293
        $region54: #{tpu_custom_call.1} parent=11 // pred_check_branch
          %513 = sbr.rel (%p511) target = $region56
        $region55: #{tpu_custom_call.1} parent=11 // pred_region
          _
        $region56: #{tpu_custom_call.1} parent=11 // pred_fallthru
          _
        // Predicated region
        $region57: #{tpu_custom_call.1} parent=11 // pred_check
          %p514 = pneg %p314
        $region58: #{tpu_custom_call.1} parent=11 // pred_check_branch
          %516 = sbr.rel (%p514) target = $region60
        $region59: #{tpu_custom_call.1} parent=11 // pred_region
          _
        $region60: #{tpu_custom_call.1} parent=11 // pred_fallthru
          _
        // Predicated region
        $region61: #{tpu_custom_call.1} parent=11 // pred_check
          %p517 = pneg %p335
        $region62: #{tpu_custom_call.1} parent=11 // pred_check_branch
          %519 = sbr.rel (%p517) target = $region64
        $region63: #{tpu_custom_call.1} parent=11 // pred_region
          _
        $region64: #{tpu_custom_call.1} parent=11 // pred_fallthru
          _
        // Predicated region
        $region65: #{tpu_custom_call.1} parent=11 // pred_check
          %p520 = pneg %p356
        $region66: #{tpu_custom_call.1} parent=11 // pred_check_branch
          %522 = sbr.rel (%p520) target = $region68
        $region67: #{tpu_custom_call.1} parent=11 // pred_region
          _
        $region68: #{tpu_custom_call.1} parent=11 // pred_fallthru
          _
        // Predicated region
        $region69: #{tpu_custom_call.1} parent=11 // pred_check
          %p523 = pneg %p377
        $region70: #{tpu_custom_call.1} parent=11 // pred_check_branch
          %525 = sbr.rel (%p523) target = $region72
        $region71: #{tpu_custom_call.1} parent=11 // pred_region
          _
        $region72: #{tpu_custom_call.1} parent=11 // pred_fallthru
          _
        // Predicated region
        $region73: #{tpu_custom_call.1} parent=11 // pred_check
          %p526 = pneg %p398
        $region74: #{tpu_custom_call.1} parent=11 // pred_check_branch
          %528 = sbr.rel (%p526) target = $region76
        $region75: #{tpu_custom_call.1} parent=11 // pred_region
          _
        $region76: #{tpu_custom_call.1} parent=11 // pred_fallthru
          _
        // Predicated region
        $region77: #{tpu_custom_call.1} parent=11 // pred_check
          %p529 = pneg %p419
        $region78: #{tpu_custom_call.1} parent=11 // pred_check_branch
          %531 = sbr.rel (%p529) target = $region80
        $region79: #{tpu_custom_call.1} parent=11 // pred_region
          _
        $region80: #{tpu_custom_call.1} parent=11 // pred_fallthru
          _
        // Predicated region
        $region81: #{tpu_custom_call.1} parent=11 // pred_check
          %p532 = pneg %p440
        $region82: #{tpu_custom_call.1} parent=11 // pred_check_branch
          %534 = sbr.rel (%p532) target = $region84
        $region83: #{tpu_custom_call.1} parent=11 // pred_region
          _
        $region84: #{tpu_custom_call.1} parent=11 // pred_fallthru
          _
      $region12: #{tpu_custom_call.1} parent=5 // pred_fallthru
        _
      %p535 = scmp.lt.s32.totalorder %s36, 8
      // Predicated region
      $region85: #{tpu_custom_call.1} parent=5 // pred_check
        %p536 = pneg %p535
      $region86: #{tpu_custom_call.1} parent=5 // pred_check_branch
        %538 = sbr.rel (%p536) target = $region88
      $region87: #{tpu_custom_call.1} parent=5 // pred_region
        // Predicated region
        $region89: #{tpu_custom_call.1} parent=87 // pred_check
          %p539 = pneg %p56
        $region90: #{tpu_custom_call.1} parent=87 // pred_check_branch
          %541 = sbr.rel (%p539) target = $region92
        $region91: #{tpu_custom_call.1} parent=87 // pred_region
          %p542 = scmp.lt.s32.totalorder %s36, 7
          %s543 = scalar_select %p542, %s36, 7
          %s544 = smul.addr %s543, 8
          %s545 = scalar_lea.vmem %s1, %s544
        $region92: #{tpu_custom_call.1} parent=87 // pred_fallthru
          _
      $region88: #{tpu_custom_call.1} parent=5 // pred_fallthru
        _
      %p546 = scmp.le.s32.totalorder 1, %s36
      %p547 = scmp.lt.s32.totalorder %s36, 9
      %p548 = pnand %p546, %p547
      %p549 = pneg %p548
      // Predicated region
      $region93: #{tpu_custom_call.1} parent=5 // pred_check
        _
      $region94: #{tpu_custom_call.1} parent=5 // pred_check_branch
        %551 = sbr.rel (%p548) target = $region96
      $region95: #{tpu_custom_call.1} parent=5 // pred_region
        %s552 = ssub.s32 %s36, 1
        %p553 = scmp.lt.s32.totalorder %s41, 7
        %s554 = scalar_select %p553, %s41, 7
        %s555 = smul.addr %s554, 8
        %s556 = scalar_lea.vmem %s1, %s555
        %p557 = pneg %p62
        %p558 = pneg %p59
        %p559 = pneg %p83
        %p560 = pneg %p80
        %p561 = pneg %p104
        %p562 = pneg %p101
        %p563 = pneg %p125
        %p564 = pneg %p122
        %p565 = pneg %p146
        %p566 = pneg %p143
        %p567 = pneg %p167
        %p568 = pneg %p164
        %p569 = pneg %p188
        %p570 = pneg %p185
        %p571 = pneg %p209
        %p572 = pneg %p206
        %p573 = pneg %p230
        %p574 = pneg %p227
        %p575 = pneg %p251
        %p576 = pneg %p248
        %p577 = pneg %p272
        %p578 = pneg %p269
        %p579 = pneg %p293
        %p580 = pneg %p290
        %p581 = pneg %p314
        %p582 = pneg %p311
        %p583 = pneg %p335
        %p584 = pneg %p332
        %p585 = pneg %p356
        %p586 = pneg %p353
        %p587 = pneg %p377
        %p588 = pneg %p374
        %p589 = pneg %p398
        %p590 = pneg %p395
        %p591 = pneg %p419
        %p592 = pneg %p416
        %p593 = pneg %p440
        %p594 = pneg %p437
        %p595 = pneg %p466
        %p596 = pneg %p463
        %s597 = sand.u32 %s453, 1
        %s598 = scalar_lea.sflag [#allocation7], %s597
        %s599 = sand.u32 %s453, 1
        %s600 = scalar_lea.vmem [#allocation6], %s599
        %p601 = scmp.lt.s32.totalorder %s41, 7
        %s602 = scalar_select %p601, %s41, 7
        %s603 = smul.addr %s602, 8
        %s604 = scalar_lea.vmem %s1, %s603
        %s606 = smul.u32 %s41, 128
        %s607 = sld [smem:[#allocation5 + %s606]]
        %s608 = scalar_lea.vmem %s2, %s607
        %p610 = scmp.lt.u32.totalorder 1, 8
        %p611 = pneg %p610
        // Predicated region
        $region97: #{tpu_custom_call.1} parent=95 // pred_check
          _
        $region98: #{tpu_custom_call.1} parent=95 // pred_check_branch
          %613 = sbr.rel (%p610) target = $region100
        $region99: #{tpu_custom_call.1} parent=95 // pred_region
          %s629 = sand.u32 1, 7
          %p630 = scmp.eq.s32.totalorder %s629, 0
          %p631 = pneg %p630
          // Predicated region
          $region112: #{tpu_custom_call.1} parent=99 // pred_check
            _
          $region113: #{tpu_custom_call.1} parent=99 // pred_check_branch
            %633 = sbr.rel (%p630) target = $region115
          $region114: #{tpu_custom_call.1} parent=99 // pred_region
            %s634 = sand.u32 1, 7
            %s635 = ssub.s32 1, %s634
            %s636 = scalar_lea.vmem %s608, %s635
            %s637 = ssub.s32 1, %s634
            %s638 = scalar_lea.vmem [#allocation2], %s637
            %s639 = sshll.u32 1, %s634
            %s640 = ssub.s32 %s639, 1
            loop: start=0, step=1, limit=1
            $region116: #{tpu_custom_call.1} parent=114 // loop_pre_header
              _
            $region117: #{tpu_custom_call.1} parent=114 // loop_header
              %s642 = sphi 0, %s646
              %p643 = scmp.ge.s32.totalorder %s642, 1
              %s647 = sphi %s636, %s636
              %s648 = sphi %s638, %s638
            $region118: #{tpu_custom_call.1} parent=114 // loop_header_branch
              %645 = sbr.rel (%p643) target = $region122
            $region119: #{tpu_custom_call.1} parent=114 // loop_body
              %v649 = vld [vmem:[%s647] sm:%s640]
              %650 = vst [vmem:[%s648] sm:%s640] %v649
            $region120: #{tpu_custom_call.1} parent=114 // loop_footer
              %s646 = sadd.s32 1, %s642
            $region121: #{tpu_custom_call.1} parent=114 // loop_footer_branch
              %641 = sbr.rel target = $region117
            $region122: #{tpu_custom_call.1} parent=114 // loop_exit
              _
          $region115: #{tpu_custom_call.1} parent=99 // pred_fallthru
            _
        $region100: #{tpu_custom_call.1} parent=95 // pred_fallthru
          _
        // Predicated region
        $region101: #{tpu_custom_call.1} parent=95 // pred_check
          %p614 = pneg %p610
        $region102: #{tpu_custom_call.1} parent=95 // pred_check_branch
          %616 = sbr.rel (%p614) target = $region104
        $region103: #{tpu_custom_call.1} parent=95 // pred_region
          %s617 = sshll.u32 1, 1
          %s618 = ssub.s32 %s617, 1
          loop: start=0, step=1, limit=1
          $region105: #{tpu_custom_call.1} parent=103 // loop_pre_header
            _
          $region106: #{tpu_custom_call.1} parent=103 // loop_header
            %s620 = sphi 0, %s624
            %p621 = scmp.ge.s32.totalorder %s620, 1
            %s625 = sphi %s608, %s608
            %s626 = sphi [#allocation2], [#allocation2]
          $region107: #{tpu_custom_call.1} parent=103 // loop_header_branch
            %623 = sbr.rel (%p621) target = $region111
          $region108: #{tpu_custom_call.1} parent=103 // loop_body
            %v627 = vld [vmem:[%s625] sm:%s618]
            %628 = vst [vmem:[%s626] sm:%s618] %v627
          $region109: #{tpu_custom_call.1} parent=103 // loop_footer
            %s624 = sadd.s32 1, %s620
          $region110: #{tpu_custom_call.1} parent=103 // loop_footer_branch
            %619 = sbr.rel target = $region106
          $region111: #{tpu_custom_call.1} parent=103 // loop_exit
            _
        $region104: #{tpu_custom_call.1} parent=95 // pred_fallthru
          _
        // Predicated region
        $region123: #{tpu_custom_call.1} parent=95 // pred_check
          _
        $region124: #{tpu_custom_call.1} parent=95 // pred_check_branch
          %653 = sbr.rel (0) target = $region126
        $region125: #{tpu_custom_call.1} parent=95 // pred_region
          %654 = vsyncadd [#allocation3], 16
        $region126: #{tpu_custom_call.1} parent=95 // pred_fallthru
          _
        %s655 = sadd.s32 %s606, 1
        %s656 = sld [smem:[#allocation5 + %s655]]
        %s657 = scalar_lea.vmem %s2, %s656
        %s658 = scalar_lea.vmem [#allocation2], 1
        %s659 = scalar_lea.sflag [#allocation3], 1
        %p661 = scmp.lt.u32.totalorder 1, 8
        %p662 = pneg %p661
        // Predicated region
        $region127: #{tpu_custom_call.1} parent=95 // pred_check
          _
        $region128: #{tpu_custom_call.1} parent=95 // pred_check_branch
          %664 = sbr.rel (%p661) target = $region130
        $region129: #{tpu_custom_call.1} parent=95 // pred_region
          %s680 = sand.u32 1, 7
          %p681 = scmp.eq.s32.totalorder %s680, 0
          %p682 = pneg %p681
          // Predicated region
          $region142: #{tpu_custom_call.1} parent=129 // pred_check
            _
          $region143: #{tpu_custom_call.1} parent=129 // pred_check_branch
            %684 = sbr.rel (%p681) target = $region145
          $region144: #{tpu_custom_call.1} parent=129 // pred_region
            %s685 = sand.u32 1, 7
            %s686 = ssub.s32 1, %s685
            %s687 = scalar_lea.vmem %s657, %s686
            %s688 = ssub.s32 1, %s685
            %s689 = scalar_lea.vmem %s658, %s688 [#allocation2]
            %s690 = sshll.u32 1, %s685
            %s691 = ssub.s32 %s690, 1
            loop: start=0, step=1, limit=1
            $region146: #{tpu_custom_call.1} parent=144 // loop_pre_header
              _
            $region147: #{tpu_custom_call.1} parent=144 // loop_header
              %s693 = sphi 0, %s697
              %p694 = scmp.ge.s32.totalorder %s693, 1
              %s698 = sphi %s687, %s687
              %s699 = sphi %s689, %s689
            $region148: #{tpu_custom_call.1} parent=144 // loop_header_branch
              %696 = sbr.rel (%p694) target = $region152
            $region149: #{tpu_custom_call.1} parent=144 // loop_body
              %v700 = vld [vmem:[%s698] sm:%s691]
              %701 = vst [vmem:[%s699] sm:%s691] %v700
            $region150: #{tpu_custom_call.1} parent=144 // loop_footer
              %s697 = sadd.s32 1, %s693
            $region151: #{tpu_custom_call.1} parent=144 // loop_footer_branch
              %692 = sbr.rel target = $region147
            $region152: #{tpu_custom_call.1} parent=144 // loop_exit
              _
          $region145: #{tpu_custom_call.1} parent=129 // pred_fallthru
            _
        $region130: #{tpu_custom_call.1} parent=95 // pred_fallthru
          _
        // Predicated region
        $region131: #{tpu_custom_call.1} parent=95 // pred_check
          %p665 = pneg %p661
        $region132: #{tpu_custom_call.1} parent=95 // pred_check_branch
          %667 = sbr.rel (%p665) target = $region134
        $region133: #{tpu_custom_call.1} parent=95 // pred_region
          %s668 = sshll.u32 1, 1
          %s669 = ssub.s32 %s668, 1
          loop: start=0, step=1, limit=1
          $region135: #{tpu_custom_call.1} parent=133 // loop_pre_header
            _
          $region136: #{tpu_custom_call.1} parent=133 // loop_header
            %s671 = sphi 0, %s675
            %p672 = scmp.ge.s32.totalorder %s671, 1
            %s676 = sphi %s657, %s657
            %s677 = sphi %s658, %s658
          $region137: #{tpu_custom_call.1} parent=133 // loop_header_branch
            %674 = sbr.rel (%p672) target = $region141
          $region138: #{tpu_custom_call.1} parent=133 // loop_body
            %v678 = vld [vmem:[%s676] sm:%s669]
            %679 = vst [vmem:[%s677] sm:%s669] %v678
          $region139: #{tpu_custom_call.1} parent=133 // loop_footer
            %s675 = sadd.s32 1, %s671
          $region140: #{tpu_custom_call.1} parent=133 // loop_footer_branch
            %670 = sbr.rel target = $region136
          $region141: #{tpu_custom_call.1} parent=133 // loop_exit
            _
        $region134: #{tpu_custom_call.1} parent=95 // pred_fallthru
          _
        // Predicated region
        $region153: #{tpu_custom_call.1} parent=95 // pred_check
          _
        $region154: #{tpu_custom_call.1} parent=95 // pred_check_branch
          %704 = sbr.rel (0) target = $region156
        $region155: #{tpu_custom_call.1} parent=95 // pred_region
          %705 = vsyncadd %s659, 16
        $region156: #{tpu_custom_call.1} parent=95 // pred_fallthru
          _
        %s706 = sadd.s32 %s606, 2
        %s707 = sld [smem:[#allocation5 + %s706]]
        %s708 = scalar_lea.vmem %s2, %s707
        %s709 = scalar_lea.vmem [#allocation2], 2
        %s710 = scalar_lea.sflag [#allocation3], 2
        %p712 = scmp.lt.u32.totalorder 1, 8
        %p713 = pneg %p712
        // Predicated region
        $region157: #{tpu_custom_call.1} parent=95 // pred_check
          _
        $region158: #{tpu_custom_call.1} parent=95 // pred_check_branch
          %715 = sbr.rel (%p712) target = $region160
        $region159: #{tpu_custom_call.1} parent=95 // pred_region
          %s731 = sand.u32 1, 7
          %p732 = scmp.eq.s32.totalorder %s731, 0
          %p733 = pneg %p732
          // Predicated region
          $region172: #{tpu_custom_call.1} parent=159 // pred_check
            _
          $region173: #{tpu_custom_call.1} parent=159 // pred_check_branch
            %735 = sbr.rel (%p732) target = $region175
          $region174: #{tpu_custom_call.1} parent=159 // pred_region
            %s736 = sand.u32 1, 7
            %s737 = ssub.s32 1, %s736
            %s738 = scalar_lea.vmem %s708, %s737
            %s739 = ssub.s32 1, %s736
            %s740 = scalar_lea.vmem %s709, %s739 [#allocation2]
            %s741 = sshll.u32 1, %s736
            %s742 = ssub.s32 %s741, 1
            loop: start=0, step=1, limit=1
            $region176: #{tpu_custom_call.1} parent=174 // loop_pre_header
              _
            $region177: #{tpu_custom_call.1} parent=174 // loop_header
              %s744 = sphi 0, %s748
              %p745 = scmp.ge.s32.totalorder %s744, 1
              %s749 = sphi %s738, %s738
              %s750 = sphi %s740, %s740
            $region178: #{tpu_custom_call.1} parent=174 // loop_header_branch
              %747 = sbr.rel (%p745) target = $region182
            $region179: #{tpu_custom_call.1} parent=174 // loop_body
              %v751 = vld [vmem:[%s749] sm:%s742]
              %752 = vst [vmem:[%s750] sm:%s742] %v751
            $region180: #{tpu_custom_call.1} parent=174 // loop_footer
              %s748 = sadd.s32 1, %s744
            $region181: #{tpu_custom_call.1} parent=174 // loop_footer_branch
              %743 = sbr.rel target = $region177
            $region182: #{tpu_custom_call.1} parent=174 // loop_exit
              _
          $region175: #{tpu_custom_call.1} parent=159 // pred_fallthru
            _
        $region160: #{tpu_custom_call.1} parent=95 // pred_fallthru
          _
        // Predicated region
        $region161: #{tpu_custom_call.1} parent=95 // pred_check
          %p716 = pneg %p712
        $region162: #{tpu_custom_call.1} parent=95 // pred_check_branch
          %718 = sbr.rel (%p716) target = $region164
        $region163: #{tpu_custom_call.1} parent=95 // pred_region
          %s719 = sshll.u32 1, 1
          %s720 = ssub.s32 %s719, 1
          loop: start=0, step=1, limit=1
          $region165: #{tpu_custom_call.1} parent=163 // loop_pre_header
            _
          $region166: #{tpu_custom_call.1} parent=163 // loop_header
            %s722 = sphi 0, %s726
            %p723 = scmp.ge.s32.totalorder %s722, 1
            %s727 = sphi %s708, %s708
            %s728 = sphi %s709, %s709
          $region167: #{tpu_custom_call.1} parent=163 // loop_header_branch
            %725 = sbr.rel (%p723) target = $region171
          $region168: #{tpu_custom_call.1} parent=163 // loop_body
            %v729 = vld [vmem:[%s727] sm:%s720]
            %730 = vst [vmem:[%s728] sm:%s720] %v729
          $region169: #{tpu_custom_call.1} parent=163 // loop_footer
            %s726 = sadd.s32 1, %s722
          $region170: #{tpu_custom_call.1} parent=163 // loop_footer_branch
            %721 = sbr.rel target = $region166
          $region171: #{tpu_custom_call.1} parent=163 // loop_exit
            _
        $region164: #{tpu_custom_call.1} parent=95 // pred_fallthru
          _
        // Predicated region
        $region183: #{tpu_custom_call.1} parent=95 // pred_check
          _
        $region184: #{tpu_custom_call.1} parent=95 // pred_check_branch
          %755 = sbr.rel (0) target = $region186
        $region185: #{tpu_custom_call.1} parent=95 // pred_region
          %756 = vsyncadd %s710, 16
        $region186: #{tpu_custom_call.1} parent=95 // pred_fallthru
          _
        %s757 = sadd.s32 %s606, 3
        %s758 = sld [smem:[#allocation5 + %s757]]
        %s759 = scalar_lea.vmem %s2, %s758
        %s760 = scalar_lea.vmem [#allocation2], 3
        %s761 = scalar_lea.sflag [#allocation3], 3
        %p763 = scmp.lt.u32.totalorder 1, 8
        %p764 = pneg %p763
        // Predicated region
        $region187: #{tpu_custom_call.1} parent=95 // pred_check
          _
        $region188: #{tpu_custom_call.1} parent=95 // pred_check_branch
          %766 = sbr.rel (%p763) target = $region190
        $region189: #{tpu_custom_call.1} parent=95 // pred_region
          %s782 = sand.u32 1, 7
          %p783 = scmp.eq.s32.totalorder %s782, 0
          %p784 = pneg %p783
          // Predicated region
          $region202: #{tpu_custom_call.1} parent=189 // pred_check
            _
          $region203: #{tpu_custom_call.1} parent=189 // pred_check_branch
            %786 = sbr.rel (%p783) target = $region205
          $region204: #{tpu_custom_call.1} parent=189 // pred_region
            %s787 = sand.u32 1, 7
            %s788 = ssub.s32 1, %s787
            %s789 = scalar_lea.vmem %s759, %s788
            %s790 = ssub.s32 1, %s787
            %s791 = scalar_lea.vmem %s760, %s790 [#allocation2]
            %s792 = sshll.u32 1, %s787
            %s793 = ssub.s32 %s792, 1
            loop: start=0, step=1, limit=1
            $region206: #{tpu_custom_call.1} parent=204 // loop_pre_header
              _
            $region207: #{tpu_custom_call.1} parent=204 // loop_header
              %s795 = sphi 0, %s799
              %p796 = scmp.ge.s32.totalorder %s795, 1
              %s800 = sphi %s789, %s789
              %s801 = sphi %s791, %s791
            $region208: #{tpu_custom_call.1} parent=204 // loop_header_branch
              %798 = sbr.rel (%p796) target = $region212
            $region209: #{tpu_custom_call.1} parent=204 // loop_body
              %v802 = vld [vmem:[%s800] sm:%s793]
              %803 = vst [vmem:[%s801] sm:%s793] %v802
            $region210: #{tpu_custom_call.1} parent=204 // loop_footer
              %s799 = sadd.s32 1, %s795
            $region211: #{tpu_custom_call.1} parent=204 // loop_footer_branch
              %794 = sbr.rel target = $region207
            $region212: #{tpu_custom_call.1} parent=204 // loop_exit
              _
          $region205: #{tpu_custom_call.1} parent=189 // pred_fallthru
            _
        $region190: #{tpu_custom_call.1} parent=95 // pred_fallthru
          _
        // Predicated region
        $region191: #{tpu_custom_call.1} parent=95 // pred_check
          %p767 = pneg %p763
        $region192: #{tpu_custom_call.1} parent=95 // pred_check_branch
          %769 = sbr.rel (%p767) target = $region194
        $region193: #{tpu_custom_call.1} parent=95 // pred_region
          %s770 = sshll.u32 1, 1
          %s771 = ssub.s32 %s770, 1
          loop: start=0, step=1, limit=1
          $region195: #{tpu_custom_call.1} parent=193 // loop_pre_header
            _
          $region196: #{tpu_custom_call.1} parent=193 // loop_header
            %s773 = sphi 0, %s777
            %p774 = scmp.ge.s32.totalorder %s773, 1
            %s778 = sphi %s759, %s759
            %s779 = sphi %s760, %s760
          $region197: #{tpu_custom_call.1} parent=193 // loop_header_branch
            %776 = sbr.rel (%p774) target = $region201
          $region198: #{tpu_custom_call.1} parent=193 // loop_body
            %v780 = vld [vmem:[%s778] sm:%s771]
            %781 = vst [vmem:[%s779] sm:%s771] %v780
          $region199: #{tpu_custom_call.1} parent=193 // loop_footer
            %s777 = sadd.s32 1, %s773
          $region200: #{tpu_custom_call.1} parent=193 // loop_footer_branch
            %772 = sbr.rel target = $region196
          $region201: #{tpu_custom_call.1} parent=193 // loop_exit
            _
        $region194: #{tpu_custom_call.1} parent=95 // pred_fallthru
          _
        // Predicated region
        $region213: #{tpu_custom_call.1} parent=95 // pred_check
          _
        $region214: #{tpu_custom_call.1} parent=95 // pred_check_branch
          %806 = sbr.rel (0) target = $region216
        $region215: #{tpu_custom_call.1} parent=95 // pred_region
          %807 = vsyncadd %s761, 16
        $region216: #{tpu_custom_call.1} parent=95 // pred_fallthru
          _
        %s808 = sadd.s32 %s606, 4
        %s809 = sld [smem:[#allocation5 + %s808]]
        %s810 = scalar_lea.vmem %s2, %s809
        %s811 = scalar_lea.vmem [#allocation2], 4
        %s812 = scalar_lea.sflag [#allocation3], 4
        %p814 = scmp.lt.u32.totalorder 1, 8
        %p815 = pneg %p814
        // Predicated region
        $region217: #{tpu_custom_call.1} parent=95 // pred_check
          _
        $region218: #{tpu_custom_call.1} parent=95 // pred_check_branch
          %817 = sbr.rel (%p814) target = $region220
        $region219: #{tpu_custom_call.1} parent=95 // pred_region
          %s833 = sand.u32 1, 7
          %p834 = scmp.eq.s32.totalorder %s833, 0
          %p835 = pneg %p834
          // Predicated region
          $region232: #{tpu_custom_call.1} parent=219 // pred_check
            _
          $region233: #{tpu_custom_call.1} parent=219 // pred_check_branch
            %837 = sbr.rel (%p834) target = $region235
          $region234: #{tpu_custom_call.1} parent=219 // pred_region
            %s838 = sand.u32 1, 7
            %s839 = ssub.s32 1, %s838
            %s840 = scalar_lea.vmem %s810, %s839
            %s841 = ssub.s32 1, %s838
            %s842 = scalar_lea.vmem %s811, %s841 [#allocation2]
            %s843 = sshll.u32 1, %s838
            %s844 = ssub.s32 %s843, 1
            loop: start=0, step=1, limit=1
            $region236: #{tpu_custom_call.1} parent=234 // loop_pre_header
              _
            $region237: #{tpu_custom_call.1} parent=234 // loop_header
              %s846 = sphi 0, %s850
              %p847 = scmp.ge.s32.totalorder %s846, 1
              %s851 = sphi %s840, %s840
              %s852 = sphi %s842, %s842
            $region238: #{tpu_custom_call.1} parent=234 // loop_header_branch
              %849 = sbr.rel (%p847) target = $region242
            $region239: #{tpu_custom_call.1} parent=234 // loop_body
              %v853 = vld [vmem:[%s851] sm:%s844]
              %854 = vst [vmem:[%s852] sm:%s844] %v853
            $region240: #{tpu_custom_call.1} parent=234 // loop_footer
              %s850 = sadd.s32 1, %s846
            $region241: #{tpu_custom_call.1} parent=234 // loop_footer_branch
              %845 = sbr.rel target = $region237
            $region242: #{tpu_custom_call.1} parent=234 // loop_exit
              _
          $region235: #{tpu_custom_call.1} parent=219 // pred_fallthru
            _
        $region220: #{tpu_custom_call.1} parent=95 // pred_fallthru
          _
        // Predicated region
        $region221: #{tpu_custom_call.1} parent=95 // pred_check
          %p818 = pneg %p814
        $region222: #{tpu_custom_call.1} parent=95 // pred_check_branch
          %820 = sbr.rel (%p818) target = $region224
        $region223: #{tpu_custom_call.1} parent=95 // pred_region
          %s821 = sshll.u32 1, 1
          %s822 = ssub.s32 %s821, 1
          loop: start=0, step=1, limit=1
          $region225: #{tpu_custom_call.1} parent=223 // loop_pre_header
            _
          $region226: #{tpu_custom_call.1} parent=223 // loop_header
            %s824 = sphi 0, %s828
            %p825 = scmp.ge.s32.totalorder %s824, 1
            %s829 = sphi %s810, %s810
            %s830 = sphi %s811, %s811
          $region227: #{tpu_custom_call.1} parent=223 // loop_header_branch
            %827 = sbr.rel (%p825) target = $region231
          $region228: #{tpu_custom_call.1} parent=223 // loop_body
            %v831 = vld [vmem:[%s829] sm:%s822]
            %832 = vst [vmem:[%s830] sm:%s822] %v831
          $region229: #{tpu_custom_call.1} parent=223 // loop_footer
            %s828 = sadd.s32 1, %s824
          $region230: #{tpu_custom_call.1} parent=223 // loop_footer_branch
            %823 = sbr.rel target = $region226
          $region231: #{tpu_custom_call.1} parent=223 // loop_exit
            _
        $region224: #{tpu_custom_call.1} parent=95 // pred_fallthru
          _
        // Predicated region
        $region243: #{tpu_custom_call.1} parent=95 // pred_check
          _
        $region244: #{tpu_custom_call.1} parent=95 // pred_check_branch
          %857 = sbr.rel (0) target = $region246
        $region245: #{tpu_custom_call.1} parent=95 // pred_region
          %858 = vsyncadd %s812, 16
        $region246: #{tpu_custom_call.1} parent=95 // pred_fallthru
          _
        %s859 = sadd.s32 %s606, 5
        %s860 = sld [smem:[#allocation5 + %s859]]
        %s861 = scalar_lea.vmem %s2, %s860
        %s862 = scalar_lea.vmem [#allocation2], 5
        %s863 = scalar_lea.sflag [#allocation3], 5
        %p865 = scmp.lt.u32.totalorder 1, 8
        %p866 = pneg %p865
        // Predicated region
        $region247: #{tpu_custom_call.1} parent=95 // pred_check
          _
        $region248: #{tpu_custom_call.1} parent=95 // pred_check_branch
          %868 = sbr.rel (%p865) target = $region250
        $region249: #{tpu_custom_call.1} parent=95 // pred_region
          %s884 = sand.u32 1, 7
          %p885 = scmp.eq.s32.totalorder %s884, 0
          %p886 = pneg %p885
          // Predicated region
          $region262: #{tpu_custom_call.1} parent=249 // pred_check
            _
          $region263: #{tpu_custom_call.1} parent=249 // pred_check_branch
            %888 = sbr.rel (%p885) target = $region265
          $region264: #{tpu_custom_call.1} parent=249 // pred_region
            %s889 = sand.u32 1, 7
            %s890 = ssub.s32 1, %s889
            %s891 = scalar_lea.vmem %s861, %s890
            %s892 = ssub.s32 1, %s889
            %s893 = scalar_lea.vmem %s862, %s892 [#allocation2]
            %s894 = sshll.u32 1, %s889
            %s895 = ssub.s32 %s894, 1
            loop: start=0, step=1, limit=1
            $region266: #{tpu_custom_call.1} parent=264 // loop_pre_header
              _
            $region267: #{tpu_custom_call.1} parent=264 // loop_header
              %s897 = sphi 0, %s901
              %p898 = scmp.ge.s32.totalorder %s897, 1
              %s902 = sphi %s891, %s891
              %s903 = sphi %s893, %s893
            $region268: #{tpu_custom_call.1} parent=264 // loop_header_branch
              %900 = sbr.rel (%p898) target = $region272
            $region269: #{tpu_custom_call.1} parent=264 // loop_body
              %v904 = vld [vmem:[%s902] sm:%s895]
              %905 = vst [vmem:[%s903] sm:%s895] %v904
            $region270: #{tpu_custom_call.1} parent=264 // loop_footer
              %s901 = sadd.s32 1, %s897
            $region271: #{tpu_custom_call.1} parent=264 // loop_footer_branch
              %896 = sbr.rel target = $region267
            $region272: #{tpu_custom_call.1} parent=264 // loop_exit
              _
          $region265: #{tpu_custom_call.1} parent=249 // pred_fallthru
            _
        $region250: #{tpu_custom_call.1} parent=95 // pred_fallthru
          _
        // Predicated region
        $region251: #{tpu_custom_call.1} parent=95 // pred_check
          %p869 = pneg %p865
        $region252: #{tpu_custom_call.1} parent=95 // pred_check_branch
          %871 = sbr.rel (%p869) target = $region254
        $region253: #{tpu_custom_call.1} parent=95 // pred_region
          %s872 = sshll.u32 1, 1
          %s873 = ssub.s32 %s872, 1
          loop: start=0, step=1, limit=1
          $region255: #{tpu_custom_call.1} parent=253 // loop_pre_header
            _
          $region256: #{tpu_custom_call.1} parent=253 // loop_header
            %s875 = sphi 0, %s879
            %p876 = scmp.ge.s32.totalorder %s875, 1
            %s880 = sphi %s861, %s861
            %s881 = sphi %s862, %s862
          $region257: #{tpu_custom_call.1} parent=253 // loop_header_branch
            %878 = sbr.rel (%p876) target = $region261
          $region258: #{tpu_custom_call.1} parent=253 // loop_body
            %v882 = vld [vmem:[%s880] sm:%s873]
            %883 = vst [vmem:[%s881] sm:%s873] %v882
          $region259: #{tpu_custom_call.1} parent=253 // loop_footer
            %s879 = sadd.s32 1, %s875
          $region260: #{tpu_custom_call.1} parent=253 // loop_footer_branch
            %874 = sbr.rel target = $region256
          $region261: #{tpu_custom_call.1} parent=253 // loop_exit
            _
        $region254: #{tpu_custom_call.1} parent=95 // pred_fallthru
          _
        // Predicated region
        $region273: #{tpu_custom_call.1} parent=95 // pred_check
          _
        $region274: #{tpu_custom_call.1} parent=95 // pred_check_branch
          %908 = sbr.rel (0) target = $region276
        $region275: #{tpu_custom_call.1} parent=95 // pred_region
          %909 = vsyncadd %s863, 16
        $region276: #{tpu_custom_call.1} parent=95 // pred_fallthru
          _
        %s910 = sadd.s32 %s606, 6
        %s911 = sld [smem:[#allocation5 + %s910]]
        %s912 = scalar_lea.vmem %s2, %s911
        %s913 = scalar_lea.vmem [#allocation2], 6
        %s914 = scalar_lea.sflag [#allocation3], 6
        %p916 = scmp.lt.u32.totalorder 1, 8
        %p917 = pneg %p916
        // Predicated region
        $region277: #{tpu_custom_call.1} parent=95 // pred_check
          _
        $region278: #{tpu_custom_call.1} parent=95 // pred_check_branch
          %919 = sbr.rel (%p916) target = $region280
        $region279: #{tpu_custom_call.1} parent=95 // pred_region
          %s935 = sand.u32 1, 7
          %p936 = scmp.eq.s32.totalorder %s935, 0
          %p937 = pneg %p936
          // Predicated region
          $region292: #{tpu_custom_call.1} parent=279 // pred_check
            _
          $region293: #{tpu_custom_call.1} parent=279 // pred_check_branch
            %939 = sbr.rel (%p936) target = $region295
          $region294: #{tpu_custom_call.1} parent=279 // pred_region
            %s940 = sand.u32 1, 7
            %s941 = ssub.s32 1, %s940
            %s942 = scalar_lea.vmem %s912, %s941
            %s943 = ssub.s32 1, %s940
            %s944 = scalar_lea.vmem %s913, %s943 [#allocation2]
            %s945 = sshll.u32 1, %s940
            %s946 = ssub.s32 %s945, 1
            loop: start=0, step=1, limit=1
            $region296: #{tpu_custom_call.1} parent=294 // loop_pre_header
              _
            $region297: #{tpu_custom_call.1} parent=294 // loop_header
              %s948 = sphi 0, %s952
              %p949 = scmp.ge.s32.totalorder %s948, 1
              %s953 = sphi %s942, %s942
              %s954 = sphi %s944, %s944
            $region298: #{tpu_custom_call.1} parent=294 // loop_header_branch
              %951 = sbr.rel (%p949) target = $region302
            $region299: #{tpu_custom_call.1} parent=294 // loop_body
              %v955 = vld [vmem:[%s953] sm:%s946]
              %956 = vst [vmem:[%s954] sm:%s946] %v955
            $region300: #{tpu_custom_call.1} parent=294 // loop_footer
              %s952 = sadd.s32 1, %s948
            $region301: #{tpu_custom_call.1} parent=294 // loop_footer_branch
              %947 = sbr.rel target = $region297
            $region302: #{tpu_custom_call.1} parent=294 // loop_exit
              _
          $region295: #{tpu_custom_call.1} parent=279 // pred_fallthru
            _
        $region280: #{tpu_custom_call.1} parent=95 // pred_fallthru
          _
        // Predicated region
        $region281: #{tpu_custom_call.1} parent=95 // pred_check
          %p920 = pneg %p916
        $region282: #{tpu_custom_call.1} parent=95 // pred_check_branch
          %922 = sbr.rel (%p920) target = $region284
        $region283: #{tpu_custom_call.1} parent=95 // pred_region
          %s923 = sshll.u32 1, 1
          %s924 = ssub.s32 %s923, 1
          loop: start=0, step=1, limit=1
          $region285: #{tpu_custom_call.1} parent=283 // loop_pre_header
            _
          $region286: #{tpu_custom_call.1} parent=283 // loop_header
            %s926 = sphi 0, %s930
            %p927 = scmp.ge.s32.totalorder %s926, 1
            %s931 = sphi %s912, %s912
            %s932 = sphi %s913, %s913
          $region287: #{tpu_custom_call.1} parent=283 // loop_header_branch
            %929 = sbr.rel (%p927) target = $region291
          $region288: #{tpu_custom_call.1} parent=283 // loop_body
            %v933 = vld [vmem:[%s931] sm:%s924]
            %934 = vst [vmem:[%s932] sm:%s924] %v933
          $region289: #{tpu_custom_call.1} parent=283 // loop_footer
            %s930 = sadd.s32 1, %s926
          $region290: #{tpu_custom_call.1} parent=283 // loop_footer_branch
            %925 = sbr.rel target = $region286
          $region291: #{tpu_custom_call.1} parent=283 // loop_exit
            _
        $region284: #{tpu_custom_call.1} parent=95 // pred_fallthru
          _
        // Predicated region
        $region303: #{tpu_custom_call.1} parent=95 // pred_check
          _
        $region304: #{tpu_custom_call.1} parent=95 // pred_check_branch
          %959 = sbr.rel (0) target = $region306
        $region305: #{tpu_custom_call.1} parent=95 // pred_region
          %960 = vsyncadd %s914, 16
        $region306: #{tpu_custom_call.1} parent=95 // pred_fallthru
          _
        %s961 = sadd.s32 %s606, 7
        %s962 = sld [smem:[#allocation5 + %s961]]
        %s963 = scalar_lea.vmem %s2, %s962
        %s964 = scalar_lea.vmem [#allocation2], 7
        %s965 = scalar_lea.sflag [#allocation3], 7
        %p967 = scmp.lt.u32.totalorder 1, 8
        %p968 = pneg %p967
        // Predicated region
        $region307: #{tpu_custom_call.1} parent=95 // pred_check
          _
        $region308: #{tpu_custom_call.1} parent=95 // pred_check_branch
          %970 = sbr.rel (%p967) target = $region310
        $region309: #{tpu_custom_call.1} parent=95 // pred_region
          %s986 = sand.u32 1, 7
          %p987 = scmp.eq.s32.totalorder %s986, 0
          %p988 = pneg %p987
          // Predicated region
          $region322: #{tpu_custom_call.1} parent=309 // pred_check
            _
          $region323: #{tpu_custom_call.1} parent=309 // pred_check_branch
            %990 = sbr.rel (%p987) target = $region325
          $region324: #{tpu_custom_call.1} parent=309 // pred_region
            %s991 = sand.u32 1, 7
            %s992 = ssub.s32 1, %s991
            %s993 = scalar_lea.vmem %s963, %s992
            %s994 = ssub.s32 1, %s991
            %s995 = scalar_lea.vmem %s964, %s994 [#allocation2]
            %s996 = sshll.u32 1, %s991
            %s997 = ssub.s32 %s996, 1
            loop: start=0, step=1, limit=1
            $region326: #{tpu_custom_call.1} parent=324 // loop_pre_header
              _
            $region327: #{tpu_custom_call.1} parent=324 // loop_header
              %s999 = sphi 0, %s1003
              %p1000 = scmp.ge.s32.totalorder %s999, 1
              %s1004 = sphi %s993, %s993
              %s1005 = sphi %s995, %s995
            $region328: #{tpu_custom_call.1} parent=324 // loop_header_branch
              %1002 = sbr.rel (%p1000) target = $region332
            $region329: #{tpu_custom_call.1} parent=324 // loop_body
              %v1006 = vld [vmem:[%s1004] sm:%s997]
              %1007 = vst [vmem:[%s1005] sm:%s997] %v1006
            $region330: #{tpu_custom_call.1} parent=324 // loop_footer
              %s1003 = sadd.s32 1, %s999
            $region331: #{tpu_custom_call.1} parent=324 // loop_footer_branch
              %998 = sbr.rel target = $region327
            $region332: #{tpu_custom_call.1} parent=324 // loop_exit
              _
          $region325: #{tpu_custom_call.1} parent=309 // pred_fallthru
            _
        $region310: #{tpu_custom_call.1} parent=95 // pred_fallthru
          _
        // Predicated region
        $region311: #{tpu_custom_call.1} parent=95 // pred_check
          %p971 = pneg %p967
        $region312: #{tpu_custom_call.1} parent=95 // pred_check_branch
          %973 = sbr.rel (%p971) target = $region314
        $region313: #{tpu_custom_call.1} parent=95 // pred_region
          %s974 = sshll.u32 1, 1
          %s975 = ssub.s32 %s974, 1
          loop: start=0, step=1, limit=1
          $region315: #{tpu_custom_call.1} parent=313 // loop_pre_header
            _
          $region316: #{tpu_custom_call.1} parent=313 // loop_header
            %s977 = sphi 0, %s981
            %p978 = scmp.ge.s32.totalorder %s977, 1
            %s982 = sphi %s963, %s963
            %s983 = sphi %s964, %s964
          $region317: #{tpu_custom_call.1} parent=313 // loop_header_branch
            %980 = sbr.rel (%p978) target = $region321
          $region318: #{tpu_custom_call.1} parent=313 // loop_body
            %v984 = vld [vmem:[%s982] sm:%s975]
            %985 = vst [vmem:[%s983] sm:%s975] %v984
          $region319: #{tpu_custom_call.1} parent=313 // loop_footer
            %s981 = sadd.s32 1, %s977
          $region320: #{tpu_custom_call.1} parent=313 // loop_footer_branch
            %976 = sbr.rel target = $region316
          $region321: #{tpu_custom_call.1} parent=313 // loop_exit
            _
        $region314: #{tpu_custom_call.1} parent=95 // pred_fallthru
          _
        // Predicated region
        $region333: #{tpu_custom_call.1} parent=95 // pred_check
          _
        $region334: #{tpu_custom_call.1} parent=95 // pred_check_branch
          %1010 = sbr.rel (0) target = $region336
        $region335: #{tpu_custom_call.1} parent=95 // pred_region
          %1011 = vsyncadd %s965, 16
        $region336: #{tpu_custom_call.1} parent=95 // pred_fallthru
          _
        %s1012 = smul.u32 1, 1
        %s1013 = sshll.u32 %s1012, 4
        %1014 = dma.done [#allocation3], %s1013
        %s1015 = sshll.u32 %s1012, 4
        %1016 = dma.done %s659, %s1015
        %s1017 = sshll.u32 %s1012, 4
        %1018 = dma.done %s710, %s1017
        %s1019 = sshll.u32 %s1012, 4
        %1020 = dma.done %s761, %s1019
        %s1021 = sshll.u32 %s1012, 4
        %1022 = dma.done %s812, %s1021
        %s1023 = sshll.u32 %s1012, 4
        %1024 = dma.done %s863, %s1023
        %s1025 = sshll.u32 %s1012, 4
        %1026 = dma.done %s914, %s1025
        %s1027 = sshll.u32 %s1012, 4
        %1028 = dma.done %s965, %s1027
        %v1029 = vld [vmem:[#allocation2] sm:$0xff]
        %v1030 = vld [vmem:[%s604] sm:$0xff]
        %v1031 = vld [vmem:[%s3] sm:$0x1]
        %v1032 = vld [vmem:[%s3 + $0x1] sm:$0x1]
        %v1033 = vsub.f32 %v1032, %v1031
        %1035 = vset.pattern.permute.xlu0 0
        %1036 = vperm.xlu0 %1035, %v1030
        %v1037 = vpop.permute.xlu0 %1036
        %v1039 = vlaneseq
        %v1040 = vshrl.u32 %v1039, 7
        %v1041 = vsub.s32 0, %v1040
        %v1042 = vrot.slane %v1033, %v1041
        %v1043 = vmul.f32 %v1037, %v1042
        %v1044 = vlaneseq
        %v1045 = vshrl.u32 %v1044, 7
        %v1046 = vsub.s32 0, %v1045
        %v1047 = vrot.slane %v1031, %v1046
        %v1048 = vadd.f32 %v1047, %v1043
        %v1049 = vadd.f32 %v1029, %v1048
        %v1050 = vld [vmem:[%s4] sm:$0xff]
        %v1051 = vadd.f32 %v1049, %v1050
        %v1052 = vld [vmem:[%s5] sm:$0x1]
        %v1053 = vld [vmem:[%s6] sm:$0x1]
        %vm1054 = vcmask 261120
        %v1055 = vsel %vm1054, %v1051, 0.0
        %1056 = vadd.xlane.f32.xlu0 %v1055
        %v1057 = vpop.xlane.xlu0 %1056
        %v1058 = vrcp.pop 32.0
        %v1059 = vmul.f32 %v1057, %v1058
        %v1060 = vsub.f32 %v1051, %v1059
        %v1061 = vmul.f32 %v1060, %v1060
        %v1062 = vsel %vm1054, %v1061, 0.0
        %1063 = vadd.xlane.f32.xlu0 %v1062
        %v1064 = vpop.xlane.xlu0 %1063
        %v1065 = vmul.f32 %v1064, %v1058
        %v1066 = vadd.f32 %v1065, 1e-12
        %v1067 = vrsqrt.pop %v1066
        %v1068 = vmul.f32 %v1060, %v1067
        %v1070 = vlaneseq
        %v1071 = vshrl.u32 %v1070, 7
        %v1072 = vsub.s32 0, %v1071
        %v1073 = vrot.slane %v1052, %v1072
        %v1075 = vmul.f32 %v1068, %v1073
        %v1077 = vlaneseq
        %v1078 = vshrl.u32 %v1077, 7
        %v1079 = vsub.s32 0, %v1078
        %v1080 = vrot.slane %v1053, %v1079
        %v1082 = vadd.f32 %v1075, %v1080
        %v1083 = vpack.c.bf16 %v1082, %v1082
        %v1084 = vld [vmem:[%s7] sm:$0xf]
        %v1085 = vld [vmem:[%s7 + $0x4] sm:$0xf]
        %v1086 = vld [vmem:[%s7 + $0x8] sm:$0xf]
        %v1087 = vld [vmem:[%s7 + $0xc] sm:$0xf]
        %v1088 = vld [vmem:[%s8] sm:$0x1]
        %v1090 = vlaneseq
        %v1091 = vshrl.u32 %v1090, 7
        %v1092 = vsub.s32 0, %v1091
        %v1093 = vrot.slane %v1088, %v1092
        %v1099 = vunpack.c.l.b16 %v1084
        %v1100 = vunpack.c.l.b16 %v1085
        %v1101 = vunpack.c.l.b16 %v1086
        %v1102 = vunpack.c.l.b16 %v1087
        %v1103 = vpack.c.b16 %v1100, %v1099
        %v1104 = vpack.c.b16 %v1102, %v1101
        %v1108 = vsel %vm1054, %v1083, 0
        %1110 = vmatprep.subr.bf16.mxu0 0
        %1111 = vmatpush1.bf16.msra.mxu0 0
        %1112 = vmatprep.subr.bf16.mxu0 0
        %1113 = vmatpush1.bf16.msra.mxu0 0
        %1114 = vmatprep.subr.bf16.mxu0 0
        %1115 = vmatpush1.bf16.msra.mxu0 0
        %1116 = vmatprep.subr.bf16.mxu0 0
        %1117 = vmatpush1.bf16.msra.mxu0 0
        %1118 = vmatprep.subr.bf16.mxu0 0
        %1119 = vmatpush1.bf16.msra.mxu0 0
        %1120 = vmatprep.subr.bf16.mxu0 0
        %1121 = vmatpush1.bf16.msra.mxu0 0
        %1122 = vmatprep.subr.bf16.mxu0 0
        %1123 = vmatpush1.bf16.msra.mxu0 %v1104
        %1124 = vmatprep.subr.bf16.mxu0 0
        %1125 = vmatpush1.bf16.msra.mxu0 %v1103
        %1126 = vmatprep.subr.bf16.mxu0 0
        %1127 = vmatpush2.bf16.msra.mxu0 0
        %1128 = vmatprep.subr.bf16.mxu0 0
        %1129 = vmatpush2.bf16.msra.mxu0 0
        %1130 = vmatprep.subr.bf16.mxu0 0
        %1131 = vmatpush2.bf16.msra.mxu0 0
        %1132 = vmatprep.subr.bf16.mxu0 0
        %1133 = vmatpush2.bf16.msra.mxu0 0
        %1134 = vmatprep.subr.bf16.mxu0 0
        %1135 = vmatpush2.bf16.msra.mxu0 0
        %1136 = vmatprep.subr.bf16.mxu0 0
        %1137 = vmatpush2.bf16.msra.mxu0 0
        %1138 = vmatprep.subr.bf16.mxu0 0
        %1139 = vmatpush2.bf16.msra.mxu0 0
        %1140 = vmatprep.subr.bf16.mxu0 0
        %1141 = vmatpush2.bf16.msra.mxu0 0
        %1142 = vmatprep.mubr.bf16.mxu0 0
        %1143 = vmatmul.mubr.bf16.gmra.mxu0 %v1108
        %v1144 = vpop.f32.mrf.mxu0
        %v1145 = vadd.f32 %v1093, %v1144
        %v1146 = vpop.f32.mrf.mxu0
        %v1147 = vpop.f32.mrf.mxu0
        %v1148 = vpop.f32.mrf.mxu0
        %1149 = vdwg.mxu0
        %v1150 = vpack.c.bf16 %v1145, %v1145
        %1152 = vrot.lane.b32.xlu0 %v1150, 96
        %v1153 = vpop.permute.xlu0 %1152
        %v1155 = vsel %vm1054, %v1150, 0
        %v1158 = vsel %vm1054, %v1153, 0
        %1160 = vmatprep.subr.bf16.mxu0 0
        %1161 = vmatpush1.bf16.xpose.msra.mxu0 0
        %1162 = vmatprep.subr.bf16.mxu0 0
        %1163 = vmatpush1.bf16.xpose.msra.mxu0 0
        %1164 = vmatprep.subr.bf16.mxu0 0
        %1165 = vmatpush1.bf16.xpose.msra.mxu0 0
        %1166 = vmatprep.subr.bf16.mxu0 0
        %1167 = vmatpush1.bf16.xpose.msra.mxu0 0
        %1168 = vmatprep.subr.bf16.mxu0 0
        %1169 = vmatpush1.bf16.xpose.msra.mxu0 0
        %1170 = vmatprep.subr.bf16.mxu0 0
        %1171 = vmatpush1.bf16.xpose.msra.mxu0 0
        %1172 = vmatprep.subr.bf16.mxu0 0
        %1173 = vmatpush1.bf16.xpose.msra.mxu0 0
        %1174 = vmatprep.subr.bf16.mxu0 0
        %1175 = vmatpush1.bf16.xpose.msra.mxu0 %v1158
        %1176 = vmatprep.subr.bf16.mxu0 0
        %1177 = vmatpush2.bf16.xpose.msra.mxu0 0
        %1178 = vmatprep.subr.bf16.mxu0 0
        %1179 = vmatpush2.bf16.xpose.msra.mxu0 0
        %1180 = vmatprep.subr.bf16.mxu0 0
        %1181 = vmatpush2.bf16.xpose.msra.mxu0 0
        %1182 = vmatprep.subr.bf16.mxu0 0
        %1183 = vmatpush2.bf16.xpose.msra.mxu0 0
        %1184 = vmatprep.subr.bf16.mxu0 0
        %1185 = vmatpush2.bf16.xpose.msra.mxu0 0
        %1186 = vmatprep.subr.bf16.mxu0 0
        %1187 = vmatpush2.bf16.xpose.msra.mxu0 0
        %1188 = vmatprep.subr.bf16.mxu0 0
        %1189 = vmatpush2.bf16.xpose.msra.mxu0 0
        %1190 = vmatprep.subr.bf16.mxu0 0
        %1191 = vmatpush2.bf16.xpose.msra.mxu0 0
        %1192 = vmatprep.mubr.bf16.mxu0 0
        %1193 = vmatmul.mubr.bf16.gmra.mxu0 %v1155
        %v1194 = vpop.f32.mrf.mxu0
        %v1195 = vadd.f32 0.0, %v1194
        %v1196 = vpop.f32.mrf.mxu0
        %v1197 = vpop.f32.mrf.mxu0
        %v1198 = vpop.f32.mrf.mxu0
        %1199 = vdwg.mxu0
        %vm1200 = vcmask 64512
        %v1201 = vsel %vm1200, %v1195, -inf
        %1202 = vmax.xlane.f32.xlu0 %v1201
        %v1203 = vpop.xlane.xlu0 %1202
        %v1204 = vsub.f32 %v1195, %v1203
        %v1205 = vmul.f32 %v1204, 1.442695
        %v1206 = vpow.pop %v1205
        %v1207 = vsel %vm1200, %v1206, 0.0
        %1208 = vadd.xlane.f32.xlu0 %v1207
        %v1209 = vpop.xlane.xlu0 %1208
        %v1210 = vrcp.pop %v1209
        %v1211 = vmul.f32 %v1206, %v1210
        %v1212 = vpack.c.bf16 %v1211, %v1211
        %1213 = vrot.lane.b32.xlu0 %v1150, 64
        %v1214 = vpop.permute.xlu0 %1213
        %v1216 = vsel %vm1200, %v1212, 0
        %vm1218 = vcmask 1043456
        %v1220 = vsel %vm1218, %v1214, 0
        %1222 = vmatprep.subr.bf16.mxu0 0
        %1223 = vmatpush1.bf16.msra.mxu0 0
        %1224 = vmatprep.subr.bf16.mxu0 0
        %1225 = vmatpush1.bf16.msra.mxu0 0
        %1226 = vmatprep.subr.bf16.mxu0 0
        %1227 = vmatpush1.bf16.msra.mxu0 0
        %1228 = vmatprep.subr.bf16.mxu0 0
        %1229 = vmatpush1.bf16.msra.mxu0 0
        %1230 = vmatprep.subr.bf16.mxu0 0
        %1231 = vmatpush1.bf16.msra.mxu0 0
        %1232 = vmatprep.subr.bf16.mxu0 0
        %1233 = vmatpush1.bf16.msra.mxu0 0
        %1234 = vmatprep.subr.bf16.mxu0 0
        %1235 = vmatpush1.bf16.msra.mxu0 0
        %1236 = vmatprep.subr.bf16.mxu0 0
        %1237 = vmatpush1.bf16.msra.mxu0 %v1220
        %1238 = vmatprep.subr.bf16.mxu0 0
        %1239 = vmatpush2.bf16.msra.mxu0 0
        %1240 = vmatprep.subr.bf16.mxu0 0
        %1241 = vmatpush2.bf16.msra.mxu0 0
        %1242 = vmatprep.subr.bf16.mxu0 0
        %1243 = vmatpush2.bf16.msra.mxu0 0
        %1244 = vmatprep.subr.bf16.mxu0 0
        %1245 = vmatpush2.bf16.msra.mxu0 0
        %1246 = vmatprep.subr.bf16.mxu0 0
        %1247 = vmatpush2.bf16.msra.mxu0 0
        %1248 = vmatprep.subr.bf16.mxu0 0
        %1249 = vmatpush2.bf16.msra.mxu0 0
        %1250 = vmatprep.subr.bf16.mxu0 0
        %1251 = vmatpush2.bf16.msra.mxu0 0
        %1252 = vmatprep.subr.bf16.mxu0 0
        %1253 = vmatpush2.bf16.msra.mxu0 0
        %1254 = vmatprep.mubr.bf16.mxu0 0
        %1255 = vmatmul.mubr.bf16.gmra.mxu0 %v1216
        %v1256 = vpop.f32.mrf.mxu0
        %v1257 = vadd.f32 0.0, %v1256
        %v1258 = vpop.f32.mrf.mxu0
        %v1259 = vpop.f32.mrf.mxu0
        %v1260 = vpop.f32.mrf.mxu0
        %1261 = vdwg.mxu0
        %v1262 = vpack.c.bf16 %v1257, %v1257
        %v1263 = vld [vmem:[%s9] sm:$0xf]
        %v1264 = vld [vmem:[%s9 + $0x4] sm:$0xf]
        %v1265 = vld [vmem:[%s9 + $0x8] sm:$0xf]
        %v1266 = vld [vmem:[%s9 + $0xc] sm:$0xf]
        %v1267 = vld [vmem:[%s10] sm:$0x1]
        %v1269 = vlaneseq
        %v1270 = vshrl.u32 %v1269, 7
        %v1271 = vsub.s32 0, %v1270
        %v1272 = vrot.slane %v1267, %v1271
        %v1278 = vunpack.c.l.b16 %v1263
        %v1279 = vunpack.c.l.b16 %v1264
        %v1280 = vunpack.c.l.b16 %v1265
        %v1281 = vunpack.c.l.b16 %v1266
        %v1282 = vpack.c.b16 %v1279, %v1278
        %v1283 = vpack.c.b16 %v1281, %v1280
        %v1287 = vsel %vm1054, %v1262, 0
        %1289 = vmatprep.subr.bf16.mxu0 0
        %1290 = vmatpush1.bf16.msra.mxu0 0
        %1291 = vmatprep.subr.bf16.mxu0 0
        %1292 = vmatpush1.bf16.msra.mxu0 0
        %1293 = vmatprep.subr.bf16.mxu0 0
        %1294 = vmatpush1.bf16.msra.mxu0 0
        %1295 = vmatprep.subr.bf16.mxu0 0
        %1296 = vmatpush1.bf16.msra.mxu0 0
        %1297 = vmatprep.subr.bf16.mxu0 0
        %1298 = vmatpush1.bf16.msra.mxu0 0
        %1299 = vmatprep.subr.bf16.mxu0 0
        %1300 = vmatpush1.bf16.msra.mxu0 0
        %1301 = vmatprep.subr.bf16.mxu0 0
        %1302 = vmatpush1.bf16.msra.mxu0 %v1283
        %1303 = vmatprep.subr.bf16.mxu0 0
        %1304 = vmatpush1.bf16.msra.mxu0 %v1282
        %1305 = vmatprep.subr.bf16.mxu0 0
        %1306 = vmatpush2.bf16.msra.mxu0 0
        %1307 = vmatprep.subr.bf16.mxu0 0
        %1308 = vmatpush2.bf16.msra.mxu0 0
        %1309 = vmatprep.subr.bf16.mxu0 0
        %1310 = vmatpush2.bf16.msra.mxu0 0
        %1311 = vmatprep.subr.bf16.mxu0 0
        %1312 = vmatpush2.bf16.msra.mxu0 0
        %1313 = vmatprep.subr.bf16.mxu0 0
        %1314 = vmatpush2.bf16.msra.mxu0 0
        %1315 = vmatprep.subr.bf16.mxu0 0
        %1316 = vmatpush2.bf16.msra.mxu0 0
        %1317 = vmatprep.subr.bf16.mxu0 0
        %1318 = vmatpush2.bf16.msra.mxu0 0
        %1319 = vmatprep.subr.bf16.mxu0 0
        %1320 = vmatpush2.bf16.msra.mxu0 0
        %1321 = vmatprep.mubr.bf16.mxu0 0
        %1322 = vmatmul.mubr.bf16.gmra.mxu0 %v1287
        %v1323 = vpop.f32.mrf.mxu0
        %v1324 = vadd.f32 %v1272, %v1323
        %v1325 = vpop.f32.mrf.mxu0
        %v1326 = vpop.f32.mrf.mxu0
        %v1327 = vpop.f32.mrf.mxu0
        %1328 = vdwg.mxu0
        %v1329 = vadd.f32 %v1082, %v1324
        %v1330 = vld [vmem:[%s11] sm:$0x1]
        %v1331 = vld [vmem:[%s12] sm:$0x1]
        %v1332 = vsel %vm1054, %v1329, 0.0
        %1333 = vadd.xlane.f32.xlu0 %v1332
        %v1334 = vpop.xlane.xlu0 %1333
        %v1335 = vmul.f32 %v1334, %v1058
        %v1336 = vsub.f32 %v1329, %v1335
        %v1337 = vmul.f32 %v1336, %v1336
        %v1338 = vsel %vm1054, %v1337, 0.0
        %1339 = vadd.xlane.f32.xlu0 %v1338
        %v1340 = vpop.xlane.xlu0 %1339
        %v1341 = vmul.f32 %v1340, %v1058
        %v1342 = vadd.f32 %v1341, 1e-12
        %v1343 = vrsqrt.pop %v1342
        %v1344 = vmul.f32 %v1336, %v1343
        %v1346 = vlaneseq
        %v1347 = vshrl.u32 %v1346, 7
        %v1348 = vsub.s32 0, %v1347
        %v1349 = vrot.slane %v1330, %v1348
        %v1351 = vmul.f32 %v1344, %v1349
        %v1353 = vlaneseq
        %v1354 = vshrl.u32 %v1353, 7
        %v1355 = vsub.s32 0, %v1354
        %v1356 = vrot.slane %v1331, %v1355
        %v1358 = vadd.f32 %v1351, %v1356
        %v1359 = vpack.c.bf16 %v1358, %v1358
        %v1360 = vld [vmem:[%s13] sm:$0xf]
        %v1361 = vld [vmem:[%s13 + $0x4] sm:$0xf]
        %v1362 = vld [vmem:[%s13 + $0x8] sm:$0xf]
        %v1363 = vld [vmem:[%s13 + $0xc] sm:$0xf]
        %v1364 = vld [vmem:[%s14] sm:$0x1]
        %v1366 = vlaneseq
        %v1367 = vshrl.u32 %v1366, 7
        %v1368 = vsub.s32 0, %v1367
        %v1369 = vrot.slane %v1364, %v1368
        %v1375 = vunpack.c.l.b16 %v1360
        %v1376 = vunpack.c.l.b16 %v1361
        %v1377 = vunpack.c.l.b16 %v1362
        %v1378 = vunpack.c.l.b16 %v1363
        %v1379 = vpack.c.b16 %v1376, %v1375
        %v1380 = vpack.c.b16 %v1378, %v1377
        %v1384 = vsel %vm1054, %v1359, 0
        %1386 = vmatprep.subr.bf16.mxu0 0
        %1387 = vmatpush1.bf16.msra.mxu0 0
        %1388 = vmatprep.subr.bf16.mxu0 0
        %1389 = vmatpush1.bf16.msra.mxu0 0
        %1390 = vmatprep.subr.bf16.mxu0 0
        %1391 = vmatpush1.bf16.msra.mxu0 0
        %1392 = vmatprep.subr.bf16.mxu0 0
        %1393 = vmatpush1.bf16.msra.mxu0 0
        %1394 = vmatprep.subr.bf16.mxu0 0
        %1395 = vmatpush1.bf16.msra.mxu0 0
        %1396 = vmatprep.subr.bf16.mxu0 0
        %1397 = vmatpush1.bf16.msra.mxu0 0
        %1398 = vmatprep.subr.bf16.mxu0 0
        %1399 = vmatpush1.bf16.msra.mxu0 %v1380
        %1400 = vmatprep.subr.bf16.mxu0 0
        %1401 = vmatpush1.bf16.msra.mxu0 %v1379
        %1402 = vmatprep.subr.bf16.mxu0 0
        %1403 = vmatpush2.bf16.msra.mxu0 0
        %1404 = vmatprep.subr.bf16.mxu0 0
        %1405 = vmatpush2.bf16.msra.mxu0 0
        %1406 = vmatprep.subr.bf16.mxu0 0
        %1407 = vmatpush2.bf16.msra.mxu0 0
        %1408 = vmatprep.subr.bf16.mxu0 0
        %1409 = vmatpush2.bf16.msra.mxu0 0
        %1410 = vmatprep.subr.bf16.mxu0 0
        %1411 = vmatpush2.bf16.msra.mxu0 0
        %1412 = vmatprep.subr.bf16.mxu0 0
        %1413 = vmatpush2.bf16.msra.mxu0 0
        %1414 = vmatprep.subr.bf16.mxu0 0
        %1415 = vmatpush2.bf16.msra.mxu0 0
        %1416 = vmatprep.subr.bf16.mxu0 0
        %1417 = vmatpush2.bf16.msra.mxu0 0
        %1418 = vmatprep.mubr.bf16.mxu0 0
        %1419 = vmatmul.mubr.bf16.gmra.mxu0 %v1384
        %v1420 = vpop.f32.mrf.mxu0
        %v1421 = vadd.f32 %v1369, %v1420
        %v1422 = vpop.f32.mrf.mxu0
        %v1423 = vpop.f32.mrf.mxu0
        %v1424 = vpop.f32.mrf.mxu0
        %1425 = vdwg.mxu0
        %v1426 = vmul.f32 %v1421, %v1421
        %v1427 = vmul.f32 %v1421, %v1426
        %v1428 = vmul.f32 %v1427, 0.044715
        %v1429 = vadd.f32 %v1421, %v1428
        %v1430 = vmul.f32 %v1429, 0.7978846
        %v1431 = vtanh.pop %v1430
        %v1432 = vadd.f32 %v1431, 1.0
        %v1433 = vmul.f32 %v1432, 0.5
        %v1434 = vmul.f32 %v1421, %v1433
        %v1435 = vpack.c.bf16 %v1434, %v1434
        %v1436 = vld [vmem:[%s15] sm:$0xf]
        %v1437 = vld [vmem:[%s15 + $0x4] sm:$0xf]
        %v1438 = vld [vmem:[%s15 + $0x8] sm:$0xf]
        %v1439 = vld [vmem:[%s15 + $0xc] sm:$0xf]
        %v1440 = vld [vmem:[%s15 + $0x10] sm:$0xf]
        %v1441 = vld [vmem:[%s15 + $0x14] sm:$0xf]
        %v1442 = vld [vmem:[%s15 + $0x18] sm:$0xf]
        %v1443 = vld [vmem:[%s15 + $0x1c] sm:$0xf]
        %v1444 = vld [vmem:[%s15 + $0x20] sm:$0xf]
        %v1445 = vld [vmem:[%s15 + $0x24] sm:$0xf]
        %v1446 = vld [vmem:[%s15 + $0x28] sm:$0xf]
        %v1447 = vld [vmem:[%s15 + $0x2c] sm:$0xf]
        %v1448 = vld [vmem:[%s15 + $0x30] sm:$0xf]
        %v1449 = vld [vmem:[%s15 + $0x34] sm:$0xf]
        %v1450 = vld [vmem:[%s15 + $0x38] sm:$0xf]
        %v1451 = vld [vmem:[%s15 + $0x3c] sm:$0xf]
        %v1452 = vld [vmem:[%s16] sm:$0x1]
        %v1454 = vlaneseq
        %v1455 = vshrl.u32 %v1454, 7
        %v1456 = vsub.s32 0, %v1455
        %v1457 = vrot.slane %v1452, %v1456
        %v1475 = vunpack.c.l.b16 %v1436
        %v1476 = vunpack.c.l.b16 %v1437
        %v1477 = vunpack.c.l.b16 %v1438
        %v1478 = vunpack.c.l.b16 %v1439
        %v1479 = vunpack.c.l.b16 %v1440
        %v1480 = vunpack.c.l.b16 %v1441
        %v1481 = vunpack.c.l.b16 %v1442
        %v1482 = vunpack.c.l.b16 %v1443
        %v1483 = vunpack.c.l.b16 %v1444
        %v1484 = vunpack.c.l.b16 %v1445
        %v1485 = vunpack.c.l.b16 %v1446
        %v1486 = vunpack.c.l.b16 %v1447
        %v1487 = vunpack.c.l.b16 %v1448
        %v1488 = vunpack.c.l.b16 %v1449
        %v1489 = vunpack.c.l.b16 %v1450
        %v1490 = vunpack.c.l.b16 %v1451
        %v1491 = vpack.c.b16 %v1476, %v1475
        %v1492 = vpack.c.b16 %v1478, %v1477
        %v1493 = vpack.c.b16 %v1480, %v1479
        %v1494 = vpack.c.b16 %v1482, %v1481
        %v1495 = vpack.c.b16 %v1484, %v1483
        %v1496 = vpack.c.b16 %v1486, %v1485
        %v1497 = vpack.c.b16 %v1488, %v1487
        %v1498 = vpack.c.b16 %v1490, %v1489
        %1507 = vmatprep.subr.bf16.mxu0 0
        %1508 = vmatpush1.bf16.msra.mxu0 %v1498
        %1509 = vmatprep.subr.bf16.mxu0 0
        %1510 = vmatpush1.bf16.msra.mxu0 %v1497
        %1511 = vmatprep.subr.bf16.mxu0 0
        %1512 = vmatpush1.bf16.msra.mxu0 %v1496
        %1513 = vmatprep.subr.bf16.mxu0 0
        %1514 = vmatpush1.bf16.msra.mxu0 %v1495
        %1515 = vmatprep.subr.bf16.mxu0 0
        %1516 = vmatpush1.bf16.msra.mxu0 %v1494
        %1517 = vmatprep.subr.bf16.mxu0 0
        %1518 = vmatpush1.bf16.msra.mxu0 %v1493
        %1519 = vmatprep.subr.bf16.mxu0 0
        %1520 = vmatpush1.bf16.msra.mxu0 %v1492
        %1521 = vmatprep.subr.bf16.mxu0 0
        %1522 = vmatpush1.bf16.msra.mxu0 %v1491
        %1523 = vmatprep.subr.bf16.mxu0 0
        %1524 = vmatpush2.bf16.msra.mxu0 0
        %1525 = vmatprep.subr.bf16.mxu0 0
        %1526 = vmatpush2.bf16.msra.mxu0 0
        %1527 = vmatprep.subr.bf16.mxu0 0
        %1528 = vmatpush2.bf16.msra.mxu0 0
        %1529 = vmatprep.subr.bf16.mxu0 0
        %1530 = vmatpush2.bf16.msra.mxu0 0
        %1531 = vmatprep.subr.bf16.mxu0 0
        %1532 = vmatpush2.bf16.msra.mxu0 0
        %1533 = vmatprep.subr.bf16.mxu0 0
        %1534 = vmatpush2.bf16.msra.mxu0 0
        %1535 = vmatprep.subr.bf16.mxu0 0
        %1536 = vmatpush2.bf16.msra.mxu0 0
        %1537 = vmatprep.subr.bf16.mxu0 0
        %1538 = vmatpush2.bf16.msra.mxu0 0
        %1539 = vmatprep.mubr.bf16.mxu0 0
        %1540 = vmatmul.mubr.bf16.gmra.mxu0 %v1435
        %v1541 = vpop.f32.mrf.mxu0
        %v1542 = vadd.f32 %v1457, %v1541
        %v1543 = vpop.f32.mrf.mxu0
        %v1544 = vpop.f32.mrf.mxu0
        %v1545 = vpop.f32.mrf.mxu0
        %1546 = vdwg.mxu0
        %v1547 = vadd.f32 %v1358, %v1542
        %v1548 = vld [vmem:[%s17] sm:$0x1]
        %v1549 = vld [vmem:[%s18] sm:$0x1]
        %v1550 = vsel %vm1054, %v1547, 0.0
        %1551 = vadd.xlane.f32.xlu0 %v1550
        %v1552 = vpop.xlane.xlu0 %1551
        %v1553 = vmul.f32 %v1552, %v1058
        %v1554 = vsub.f32 %v1547, %v1553
        %v1555 = vmul.f32 %v1554, %v1554
        %v1556 = vsel %vm1054, %v1555, 0.0
        %1557 = vadd.xlane.f32.xlu0 %v1556
        %v1558 = vpop.xlane.xlu0 %1557
        %v1559 = vmul.f32 %v1558, %v1058
        %v1560 = vadd.f32 %v1559, 1e-12
        %v1561 = vrsqrt.pop %v1560
        %v1562 = vmul.f32 %v1554, %v1561
        %v1564 = vlaneseq
        %v1565 = vshrl.u32 %v1564, 7
        %v1566 = vsub.s32 0, %v1565
        %v1567 = vrot.slane %v1548, %v1566
        %v1569 = vmul.f32 %v1562, %v1567
        %v1571 = vlaneseq
        %v1572 = vshrl.u32 %v1571, 7
        %v1573 = vsub.s32 0, %v1572
        %v1574 = vrot.slane %v1549, %v1573
        %v1576 = vadd.f32 %v1569, %v1574
        %v1577 = vpack.c.bf16 %v1576, %v1576
        %v1578 = vld [vmem:[%s19] sm:$0xf]
        %v1579 = vld [vmem:[%s19 + $0x4] sm:$0xf]
        %v1580 = vld [vmem:[%s19 + $0x8] sm:$0xf]
        %v1581 = vld [vmem:[%s19 + $0xc] sm:$0xf]
        %v1582 = vld [vmem:[%s20] sm:$0x1]
        %v1587 = vunpack.c.l.b16 %v1578
        %v1588 = vunpack.c.l.b16 %v1579
        %v1589 = vunpack.c.l.b16 %v1580
        %v1590 = vunpack.c.l.b16 %v1581
        %v1591 = vpack.c.b16 %v1588, %v1587
        %v1592 = vpack.c.b16 %v1590, %v1589
        %v1596 = vsel %vm1054, %v1577, 0
        %1598 = vmatprep.subr.bf16.mxu0 0
        %1599 = vmatpush1.bf16.msra.mxu0 0
        %1600 = vmatprep.subr.bf16.mxu0 0
        %1601 = vmatpush1.bf16.msra.mxu0 0
        %1602 = vmatprep.subr.bf16.mxu0 0
        %1603 = vmatpush1.bf16.msra.mxu0 0
        %1604 = vmatprep.subr.bf16.mxu0 0
        %1605 = vmatpush1.bf16.msra.mxu0 0
        %1606 = vmatprep.subr.bf16.mxu0 0
        %1607 = vmatpush1.bf16.msra.mxu0 0
        %1608 = vmatprep.subr.bf16.mxu0 0
        %1609 = vmatpush1.bf16.msra.mxu0 0
        %1610 = vmatprep.subr.bf16.mxu0 0
        %1611 = vmatpush1.bf16.msra.mxu0 %v1592
        %1612 = vmatprep.subr.bf16.mxu0 0
        %1613 = vmatpush1.bf16.msra.mxu0 %v1591
        %1614 = vmatprep.subr.bf16.mxu0 0
        %1615 = vmatpush2.bf16.msra.mxu0 0
        %1616 = vmatprep.subr.bf16.mxu0 0
        %1617 = vmatpush2.bf16.msra.mxu0 0
        %1618 = vmatprep.subr.bf16.mxu0 0
        %1619 = vmatpush2.bf16.msra.mxu0 0
        %1620 = vmatprep.subr.bf16.mxu0 0
        %1621 = vmatpush2.bf16.msra.mxu0 0
        %1622 = vmatprep.subr.bf16.mxu0 0
        %1623 = vmatpush2.bf16.msra.mxu0 0
        %1624 = vmatprep.subr.bf16.mxu0 0
        %1625 = vmatpush2.bf16.msra.mxu0 0
        %1626 = vmatprep.subr.bf16.mxu0 0
        %1627 = vmatpush2.bf16.msra.mxu0 0
        %1628 = vmatprep.subr.bf16.mxu0 0
        %1629 = vmatpush2.bf16.msra.mxu0 0
        %1630 = vmatprep.mubr.bf16.mxu0 0
        %1631 = vmatmul.mubr.bf16.gmra.mxu0 %v1596
        %v1632 = vpop.f32.mrf.mxu0
        %v1633 = vadd.f32 %v1582, %v1632
        %v1634 = vpop.f32.mrf.mxu0
        %v1635 = vpop.f32.mrf.mxu0
        %v1636 = vpop.f32.mrf.mxu0
        %1637 = vdwg.mxu0
        %v1638 = vtanh.pop %v1633
        %vm1639 = vcmask 253952
        %1640 = vst.msk [vmem:[%s600] sm:$0x1] %vm1639, %v1638
        %s1641 = sand.u32 %s453, 1
        %s1642 = scalar_lea.sflag [#allocation7], %s1641
        %s1643 = sand.u32 %s453, 1
        %s1644 = scalar_lea.vmem [#allocation6], %s1643
        // Predicated region
        $region337: #{tpu_custom_call.1} parent=95 // pred_check
          %p1645 = pneg %p463
        $region338: #{tpu_custom_call.1} parent=95 // pred_check_branch
          %1647 = sbr.rel (%p1645) target = $region340
        $region339: #{tpu_custom_call.1} parent=95 // pred_region
          %s1649 = ssub.s32 16, 16
          %1650 = vsyncadd %s1642, %s1649
          %s1651 = smul.addr %s41, 16
          %s1652 = scalar_lea.hbm %s21, %s1651
          %s1654 = sshll.u32 %s1644, 4
          %s1655 = int_to_ptr.vmem [resolvable:$true] %s1654
          %1657 = dma.vmem_to_hbm [thread:$0]  %s1655, 16, %s1652, %s1642
        $region340: #{tpu_custom_call.1} parent=95 // pred_fallthru
          _
      $region96: #{tpu_custom_call.1} parent=5 // pred_fallthru
        _
      %p1658 = scmp.le.s32.totalorder 2, %s36
      // Predicated region
      $region341: #{tpu_custom_call.1} parent=5 // pred_check
        %p1659 = pneg %p1658
      $region342: #{tpu_custom_call.1} parent=5 // pred_check_branch
        %1661 = sbr.rel (%p1659) target = $region344
      $region343: #{tpu_custom_call.1} parent=5 // pred_region
        %s1662 = ssub.s32 %s36, 2
        // Predicated region
        $region345: #{tpu_custom_call.1} parent=343 // pred_check
          %p1663 = pneg %p469
        $region346: #{tpu_custom_call.1} parent=343 // pred_check_branch
          %1665 = sbr.rel (%p1663) target = $region348
        $region347: #{tpu_custom_call.1} parent=343 // pred_region
          %s1666 = sand.u32 %s454, 1
          %s1667 = scalar_lea.sflag [#allocation7], %s1666
          %s1668 = sand.u32 %s454, 1
          %s1669 = scalar_lea.vmem [#allocation6], %s1668
          %1670 = dma.done %s1667, 16
        $region348: #{tpu_custom_call.1} parent=343 // pred_fallthru
          _
      $region344: #{tpu_custom_call.1} parent=5 // pred_fallthru
        _
    $region6: #{tpu_custom_call.1} parent=1 // loop_footer
      %s40 = sadd.s32 1, %s36
    $region7: #{tpu_custom_call.1} parent=1 // loop_footer_branch
      %35 = sbr.rel target = $region3
    $region8: #{tpu_custom_call.1} parent=1 // loop_exit
      _
    %1671 = vsyncpa [#allocation7], 1
    %s1672 = scalar_lea.sflag [#allocation7], 1
    %1673 = vsyncpa %s1672, 1
  %1674 = vsyncmov [#allocation3]
  %s1675 = vpop.sfrf %1674
  %p1676 = scmp.eq.s32.totalorder %s1675, 0
  %p1677 = pneg %p1676
  %1679 = shalt.err (%p1677)
  %s1680 = scalar_lea.sflag [#allocation3], 1
  %1681 = vsyncmov %s1680
  %s1682 = vpop.sfrf %1681
  %p1683 = scmp.eq.s32.totalorder %s1682, 0
  %p1684 = pneg %p1683
  %1686 = shalt.err (%p1684)
  %s1687 = scalar_lea.sflag [#allocation3], 2
  %1688 = vsyncmov %s1687
  %s1689 = vpop.sfrf %1688
  %p1690 = scmp.eq.s32.totalorder %s1689, 0
  %p1691 = pneg %p1690
  %1693 = shalt.err (%p1691)
  %s1694 = scalar_lea.sflag [#allocation3], 3
  %1695 = vsyncmov %s1694
  %s1696 = vpop.sfrf %1695
  %p1697 = scmp.eq.s32.totalorder %s1696, 0
  %p1698 = pneg %p1697
  %1700 = shalt.err (%p1698)
  %s1701 = scalar_lea.sflag [#allocation3], 4
  %1702 = vsyncmov %s1701
  %s1703 = vpop.sfrf %1702
  %p1704 = scmp.eq.s32.totalorder %s1703, 0
  %p1705 = pneg %p1704
  %1707 = shalt.err (%p1705)
  %s1708 = scalar_lea.sflag [#allocation3], 5
  %1709 = vsyncmov %s1708
  %s1710 = vpop.sfrf %1709
  %p1711 = scmp.eq.s32.totalorder %s1710, 0
  %p1712 = pneg %p1711
  %1714 = shalt.err (%p1712)
  %s1715 = scalar_lea.sflag [#allocation3], 6
  %1716 = vsyncmov %s1715
  %s1717 = vpop.sfrf %1716
  %p1718 = scmp.eq.s32.totalorder %s1717, 0
  %p1719 = pneg %p1718
  %1721 = shalt.err (%p1719)
  %s1722 = scalar_lea.sflag [#allocation3], 7
  %1723 = vsyncmov %s1722
  %s1724 = vpop.sfrf %1723
  %p1725 = scmp.eq.s32.totalorder %s1724, 0
  %p1726 = pneg %p1725
  %1728 = shalt.err (%p1726)

</llo_original>
